<compile_context>
chip_gen: v5e
topology: v5e:2x2
jax: 0.10.0
libtpu: 0.0.40
codegen_flags: <defaults>
</compile_context>

<pallas_src>
import functools

import jax
import jax.numpy as jnp
from jax import lax
from jax.experimental import pallas as pl
from jax.experimental.pallas import tpu as pltpu


HSEQ_DTYPE = jnp.bfloat16              # inter-layer activation storage dtype
VMEM_LIMIT_BYTES = 48 * 1024 * 1024    # explicit scoped-VMEM cap (safe on v5e/v6e/v7x)
VMEM_BUDGET_BYTES = 24 * 1024 * 1024   # budget used to size the time chunk
MAX_TIME_CHUNK = 512
TIME_UNROLL = 8


# ----------------------------------------------------------------------------
# Shared gate math. Gate column order is [i, f, o, g] (permuted at prep time),
# so one sigmoid over the first 3H columns and one tanh over the last H.
# ----------------------------------------------------------------------------
def _apply_gates(gates, c_prev, H):
    sig = jax.nn.sigmoid(gates[:, : 3 * H])
    g_g = jnp.tanh(gates[:, 3 * H:])
    i_g = sig[:, :H]
    f_g = sig[:, H:2 * H]
    o_g = sig[:, 2 * H:3 * H]
    # NOTE: for H < 128 the i/f/o extraction costs a few XLU lane rotations per
    # step; kept as a single wide MXU matmul + slices (best MXU utilization).
    c_new = f_g * c_prev + i_g * g_g
    h_new = o_g * jnp.tanh(c_new)
    return h_new, c_new


def _project_chunk(x_ref, wih_ref, bias_ref, xp_sc):
    """In-kernel hoisted input projection for a whole time chunk.

    One MXU matmul with T folded into M; the result stays in VMEM scratch
    (never written to HBM)."""
    Tc, Bt, Din = x_ref.shape
    H4 = wih_ref.shape[1]
    xblk = x_ref[...].reshape(Tc * Bt, Din).astype(jnp.float32)
    xp = jnp.dot(xblk, wih_ref[...],
                 preferred_element_type=jnp.float32) + bias_ref[...]
    xp_sc[...] = xp.reshape(Tc, Bt, H4)


def _recurrence(xp_sc, whh, h0, c0, Tc, chunk, t_real, needs_mask,
                hseq_ref=None):
    """Run the serial LSTM recurrence over one VMEM-resident chunk."""
    H = whh.shape[0]

    def step(t, carry):
        h, c = carry
        gates = xp_sc[t] + jnp.dot(h, whh, preferred_element_type=jnp.float32)
        h_new, c_new = _apply_gates(gates, c, H)
        if needs_mask:  # static Python bool: only emitted when T was padded
            valid = chunk * Tc + t < t_real
            h_new = jnp.where(valid, h_new, h)
            c_new = jnp.where(valid, c_new, c)
        if hseq_ref is not None:
            hseq_ref[t] = h_new.astype(hseq_ref.dtype)
        return h_new, c_new

    return lax.fori_loop(0, Tc, step, (h0, c0), unroll=min(Tc, TIME_UNROLL))


# ----------------------------------------------------------------------------
# Intermediate LSTM layer: in-kernel input projection + recurrence over a
# T-chunk; writes the h_seq chunk (bf16) for the next layer.
# ----------------------------------------------------------------------------
def _lstm_seq_kernel(x_ref, wih_ref, bias_ref, whh_ref, hseq_ref,
                     xp_sc, h_sc, c_sc, *, t_real, needs_mask):
    chunk = pl.program_id(1)

    @pl.when(chunk == 0)
    def _():
        h_sc[...] = jnp.zeros_like(h_sc)
        c_sc[...] = jnp.zeros_like(c_sc)

    _project_chunk(x_ref, wih_ref, bias_ref, xp_sc)

    Tc = x_ref.shape[0]
    whh = whh_ref[...]                       # hoisted weight load
    h, c = _recurrence(xp_sc, whh, h_sc[...], c_sc[...], Tc, chunk,
                       t_real, needs_mask, hseq_ref=hseq_ref)
    h_sc[...] = h
    c_sc[...] = c


# ----------------------------------------------------------------------------
# Last LSTM layer + fused FC head. Only the final hidden state is kept (no
# h_seq HBM write); the FC head runs in the epilogue of the last T-chunk.
# ----------------------------------------------------------------------------
def _lstm_last_fc_kernel(x_ref, wih_ref, bias_ref, whh_ref,
                         w1_ref, b1_ref, w2_ref, b2_ref,
                         out_ref, xp_sc, h_sc, c_sc, *, t_real, needs_mask):
    chunk = pl.program_id(1)
    n_chunks = pl.num_programs(1)

    @pl.when(chunk == 0)
    def _():
        h_sc[...] = jnp.zeros_like(h_sc)
        c_sc[...] = jnp.zeros_like(c_sc)

    _project_chunk(x_ref, wih_ref, bias_ref, xp_sc)

    Tc = x_ref.shape[0]
    whh = whh_ref[...]
    h, c = _recurrence(xp_sc, whh, h_sc[...], c_sc[...], Tc, chunk,
                       t_real, needs_mask)
    h_sc[...] = h
    c_sc[...] = c

    @pl.when(chunk == n_chunks - 1)
    def _():
        # FC head: Linear(H, H/2) -> ReLU -> (Dropout = identity) -> Linear(H/2, 1)
        z = jnp.dot(h, w1_ref[...], preferred_element_type=jnp.float32) + b1_ref[...]
        z = jnp.maximum(z, 0.0)
        # TODO(synk): dropout omitted (inference/eval-mode forward).
        # N=1 second linear as VPU multiply + lane reduction (no wasted MXU push).
        y = jnp.sum(z * w2_ref[...], axis=-1, keepdims=True) + b2_ref[...]
        out_ref[...] = y.astype(out_ref.dtype)


# ----------------------------------------------------------------------------
# Wrappers
# ----------------------------------------------------------------------------
def _round_up(x, m):
    return ((x + m - 1) // m) * m


def _pick_time_chunk(T, Bt, d_in_max, H):
    """Largest T-chunk whose per-chunk working set fits the VMEM budget."""
    hseq_bytes = jnp.dtype(HSEQ_DTYPE).itemsize
    per_t = Bt * (2 * d_in_max * 4       # input block, double-buffered (<= f32)
                  + 2 * H * hseq_bytes   # h_seq out block, double-buffered
                  + 4 * H * 4)           # xp scratch (f32)
    fixed = (4 * (d_in_max * 4 * H + H * 4 * H + H * max(H // 2, 1) + 4 * H)
             + 2 * Bt * H * 4 + (256 << 10))
    tc = (VMEM_BUDGET_BYTES - fixed) // max(per_t, 1)
    return int(max(1, min(T, MAX_TIME_CHUNK, tc)))


def _lstm_layer_seq(x_seq, lp, Bt, Tc, t_real, needs_mask):
    """One (non-final) LSTM layer. x_seq: (T_pad, B_pad, d_in) time-major.
    Returns h_seq (T_pad, B_pad, H) in HSEQ_DTYPE."""
    T_pad, B_pad, Din = x_seq.shape
    H = lp["w_hh_t"].shape[0]
    H4 = 4 * H
    nb, nc = B_pad // Bt, T_pad // Tc
    kernel = functools.partial(_lstm_seq_kernel,
                               t_real=t_real, needs_mask=needs_mask)
    return pl.pallas_call(
        kernel,
        out_shape=jax.ShapeDtypeStruct((T_pad, B_pad, H), HSEQ_DTYPE),
        grid_spec=pltpu.PrefetchScalarGridSpec(
            num_scalar_prefetch=0,
            grid=(nb, nc),
            in_specs=[
                pl.BlockSpec((Tc, Bt, Din), lambda b, c: (c, b, 0)),
                pl.BlockSpec((Din, H4), lambda b, c: (0, 0)),
                pl.BlockSpec((1, H4), lambda b, c: (0, 0)),
                pl.BlockSpec((H, H4), lambda b, c: (0, 0)),
            ],
            out_specs=pl.BlockSpec((Tc, Bt, H), lambda b, c: (c, b, 0)),
            scratch_shapes=[
                pltpu.VMEM((Tc, Bt, H4), jnp.float32),  # xp chunk (never hits HBM)
                pltpu.VMEM((Bt, H), jnp.float32),       # h carry across chunks
                pltpu.VMEM((Bt, H), jnp.float32),       # c carry across chunks
            ],
        ),
        compiler_params=pltpu.CompilerParams(
            dimension_semantics=("parallel", "arbitrary"),
            vmem_limit_bytes=VMEM_LIMIT_BYTES,
        ),
    )(x_seq, lp["w_ih_t"], lp["bias"], lp["w_hh_t"])


def _lstm_last_layer_fc(x_seq, lp, fc, Bt, Tc, t_real, needs_mask):
    """Final LSTM layer recurrence + fused FC head. Returns (B_pad, 1)."""
    T_pad, B_pad, Din = x_seq.shape
    H = lp["w_hh_t"].shape[0]
    H4 = 4 * H
    half = fc["w1_t"].shape[1]
    nb, nc = B_pad // Bt, T_pad // Tc
    kernel = functools.partial(_lstm_last_fc_kernel,
                               t_real=t_real, needs_mask=needs_mask)
    return pl.pallas_call(
        kernel,
        out_shape=jax.ShapeDtypeStruct((B_pad, 1), jnp.float32),
        grid_spec=pltpu.PrefetchScalarGridSpec(
            num_scalar_prefetch=0,
            grid=(nb, nc),
            in_specs=[
                pl.BlockSpec((Tc, Bt, Din), lambda b, c: (c, b, 0)),
                pl.BlockSpec((Din, H4), lambda b, c: (0, 0)),
                pl.BlockSpec((1, H4), lambda b, c: (0, 0)),
                pl.BlockSpec((H, H4), lambda b, c: (0, 0)),
                pl.BlockSpec((H, half), lambda b, c: (0, 0)),
                pl.BlockSpec((1, half), lambda b, c: (0, 0)),
                pl.BlockSpec((1, half), lambda b, c: (0, 0)),
                pl.BlockSpec((1, 1), lambda b, c: (0, 0)),
            ],
            out_specs=pl.BlockSpec((Bt, 1), lambda b, c: (b, 0)),
            scratch_shapes=[
                pltpu.VMEM((Tc, Bt, H4), jnp.float32),  # xp chunk
                pltpu.VMEM((Bt, H), jnp.float32),       # h carry
                pltpu.VMEM((Bt, H), jnp.float32),       # c carry
            ],
        ),
        compiler_params=pltpu.CompilerParams(
            dimension_semantics=("parallel", "arbitrary"),
            vmem_limit_bytes=VMEM_LIMIT_BYTES,
        ),
    )(x_seq, lp["w_ih_t"], lp["bias"], lp["w_hh_t"],
      fc["w1_t"], fc["b1"], fc["w2_row"], fc["b2"])


# ----------------------------------------------------------------------------
# Parameters (PyTorch layout) and kernel-layout preparation
# ----------------------------------------------------------------------------
def init_params(key, input_dim, hidden_dim, num_layers):
    """Raw params in PyTorch nn.LSTM / nn.Linear layout, gate order [i, f, g, o]."""
    H = hidden_dim
    half = H // 2
    params = {"lstm": [], "fc": {}}
    k = 1.0 / jnp.sqrt(H)
    keys = jax.random.split(key, num_layers * 4 + 4)
    ki = 0
    for layer in range(num_layers):
        d_in = input_dim if layer == 0 else H
        w_ih = jax.random.uniform(keys[ki], (4 * H, d_in), jnp.float32, -k, k); ki += 1
        w_hh = jax.random.uniform(keys[ki], (4 * H, H), jnp.float32, -k, k); ki += 1
        b_ih = jax.random.uniform(keys[ki], (4 * H,), jnp.float32, -k, k); ki += 1
        b_hh = jax.random.uniform(keys[ki], (4 * H,), jnp.float32, -k, k); ki += 1
        params["lstm"].append({"w_ih": w_ih, "w_hh": w_hh, "b_ih": b_ih, "b_hh": b_hh})
    k1 = 1.0 / jnp.sqrt(H)
    k2 = 1.0 / jnp.sqrt(half)
    params["fc"] = {
        "w1": jax.random.uniform(keys[ki + 0], (half, H), jnp.float32, -k1, k1),
        "b1": jax.random.uniform(keys[ki + 1], (half,), jnp.float32, -k1, k1),
        "w2": jax.random.uniform(keys[ki + 2], (1, half), jnp.float32, -k2, k2),
        "b2": jax.random.uniform(keys[ki + 3], (1,), jnp.float32, -k2, k2),
    }
    return params


def prepare_params(raw):
    """PyTorch layout -> kernel layout: transpose weights, fold biases, and
    permute gate columns [i, f, g, o] -> [i, f, o, g]."""
    H = raw["lstm"][0]["w_hh"].shape[1]
    perm = jnp.concatenate([
        jnp.arange(0, 2 * H),        # i, f
        jnp.arange(3 * H, 4 * H),    # o
        jnp.arange(2 * H, 3 * H),    # g
    ])
    kp = {"lstm": [], "fc": {}}
    for lp in raw["lstm"]:
        kp["lstm"].append({
            "w_ih_t": lp["w_ih"][perm].T,                              # (d_in, 4H)
            "w_hh_t": lp["w_hh"][perm].T,                              # (H, 4H)
            "bias": (lp["b_ih"] + lp["b_hh"])[perm].reshape(1, 4 * H), # (1, 4H)
        })
    half = raw["fc"]["w1"].shape[0]
    kp["fc"] = {
        "w1_t": raw["fc"]["w1"].T,                    # (H, half)
        "b1": raw["fc"]["b1"].reshape(1, half),       # (1, half)
        "w2_row": raw["fc"]["w2"].reshape(1, half),   # (1, half)
        "b2": raw["fc"]["b2"].reshape(1, 1),          # (1, 1)
    }
    return kp


# ----------------------------------------------------------------------------
# Full model forward (eval mode: dropout = identity)
# ----------------------------------------------------------------------------
@jax.jit
def lstm_regressor_forward(kparams, x):
    """x: (B, T, input_dim), batch-first like nn.LSTM(batch_first=True) -> (B, 1)."""
    x = x.astype(jnp.float32)
    B, T, Din = x.shape
    n_layers = len(kparams["lstm"])
    H = kparams["lstm"][0]["w_hh_t"].shape[0]

    # Batch padding: at least 8 sublanes; tile at 128 rows for very large batches.
    B_pad = _round_up(B, 8)
    if B_pad > 128:
        B_pad = _round_up(B_pad, 128)
        Bt = 128
    else:
        Bt = B_pad

    # VMEM-budget-aware time chunk + ragged-tail handling via padding + masking.
    Tc = _pick_time_chunk(T, Bt, max(Din, H), H)
    T_pad = _round_up(T, Tc)
    needs_mask = T_pad != T

    # Single relayout to time-major of the raw input (the smallest tensor in
    # the model); every later layer's h_seq is produced in time-major already.
    x_seq = jnp.transpose(x, (1, 0, 2))
    x_seq = jnp.pad(x_seq, ((0, T_pad - T), (0, B_pad - B), (0, 0)))

    cur = x_seq
    out = None
    for l, lp in enumerate(kparams["lstm"]):
        if l < n_layers - 1:
            cur = _lstm_layer_seq(cur, lp, Bt, Tc, T, needs_mask)   # (T_pad,B_pad,H) bf16
            # TODO(synk): inter-layer dropout omitted (eval-mode forward).
        else:
            out = _lstm_last_layer_fc(cur, lp, kparams["fc"], Bt, Tc, T, needs_mask)
    return out[:B]


# ----------------------------------------------------------------------------
# Pure-JAX reference (PyTorch nn.LSTM semantics, gate order [i, f, g, o])
# ----------------------------------------------------------------------------
def lstm_regressor_reference(raw, x):
    x = x.astype(jnp.float32)
    B = x.shape[0]
    x_seq = jnp.transpose(x, (1, 0, 2))
    H = raw["lstm"][0]["w_hh"].shape[1]
    for lp in raw["lstm"]:
        w_ih, w_hh = lp["w_ih"], lp["w_hh"]
        b = lp["b_ih"] + lp["b_hh"]

        def step(carry, x_t, w_ih=w_ih, w_hh=w_hh, b=b):
            h, c = carry
            gates = x_t @ w_ih.T + h @ w_hh.T + b
            i = jax.nn.sigmoid(gates[:, :H])
            f = jax.nn.sigmoid(gates[:, H:2 * H])
            g = jnp.tanh(gates[:, 2 * H:3 * H])
            o = jax.nn.sigmoid(gates[:, 3 * H:])
            c = f * c + i * g
            h = o * jnp.tanh(c)
            return (h, c), h

        init = (jnp.zeros((B, H), jnp.float32), jnp.zeros((B, H), jnp.float32))
        _, x_seq = lax.scan(step, init, x_seq)
    h_last = x_seq[-1]
    fc = raw["fc"]
    z = jnp.maximum(h_last @ fc["w1"].T + fc["b1"], 0.0)
    return z @ fc["w2"].T + fc["b2"]


if __name__ == "__main__":
    INPUT_DIM = 8
    HIDDEN_DIM = 32
    NUM_LAYERS = 2
    BATCH = 2
    SEQ = 8

    key = jax.random.PRNGKey(0)
    k_param, k_x = jax.random.split(key)
    raw_params = init_params(k_param, INPUT_DIM, HIDDEN_DIM, NUM_LAYERS)
    kparams = prepare_params(raw_params)
    x = jax.random.normal(k_x, (BATCH, SEQ, INPUT_DIM), dtype=jnp.float32)

    out = lstm_regressor_forward(kparams, x)
    out = jax.block_until_ready(out)
    assert out.shape == (BATCH, 1), out.shape

    ref = lstm_regressor_reference(raw_params, x)
    # Inter-layer h_seq is stored in bf16 (perf optimization), so compare with a
    # correspondingly looser tolerance than a pure-f32 pipeline would need.
    assert jnp.allclose(out, ref, atol=2e-2, rtol=2e-2), (out, ref)

    print("KERNEL_OK")
</pallas_src>

<mosaic_0001>
module attributes {stable_mosaic.version = 11 : i64} {
  func.func @_lstm_seq_kernel(%arg0: i32, %arg1: i32, %arg2: memref<8x8x8xf32, #tpu.memory_space<vmem>>, %arg3: memref<8x128xf32, #tpu.memory_space<vmem>>, %arg4: memref<1x128xf32, #tpu.memory_space<vmem>>, %arg5: memref<32x128xf32, #tpu.memory_space<vmem>>, %arg6: memref<8x8x32xbf16, #tpu.memory_space<vmem>>, %arg7: memref<8x8x128xf32, #tpu.memory_space<vmem>>, %arg8: memref<8x32xf32, #tpu.memory_space<vmem>>, %arg9: memref<8x32xf32, #tpu.memory_space<vmem>>) attributes {dimension_semantics = [#tpu.dimension_semantics<parallel>, #tpu.dimension_semantics<arbitrary>], iteration_bounds = array<i64: 1, 1>, scalar_prefetch = 0 : i64, scratch_operands = 3 : i64, tpu.core_type = #tpu.core_type<tc>, window_params = [{transform_indices = @transform_0, window_bounds = array<i64: 8, 8, 8>}, {pipeline_mode = #tpu.pipeline_mode<synchronous>, transform_indices = @transform_1, window_bounds = array<i64: 8, 128>}, {pipeline_mode = #tpu.pipeline_mode<synchronous>, transform_indices = @transform_2, window_bounds = array<i64: 1, 128>}, {pipeline_mode = #tpu.pipeline_mode<synchronous>, transform_indices = @transform_3, window_bounds = array<i64: 32, 128>}, {transform_indices = @transform_4, window_bounds = array<i64: 8, 8, 32>}]} {
    %c0_i32 = arith.constant 0 : i32
    %0 = arith.cmpi eq, %arg1, %c0_i32 : i32
    %1 = arith.extui %0 : i1 to i32
    %c0_i32_0 = arith.constant 0 : i32
    %2 = arith.cmpi ne, %1, %c0_i32_0 : i32
    scf.if %2 {
      %cst_69 = arith.constant 0.000000e+00 : f32
      %225 = vector.broadcast %cst_69 : f32 to vector<8x32xf32>
      %c0_70 = arith.constant 0 : index
      %c0_71 = arith.constant 0 : index
      %226 = vector.load %arg8[%c0_70, %c0_71] : memref<8x32xf32, #tpu.memory_space<vmem>>, vector<8x32xf32>
      tpu.vector_store %arg8[%c0_70, %c0_71], %225 {strides = array<i32>} : memref<8x32xf32, #tpu.memory_space<vmem>>, vector<8x32xf32>,
      %cst_72 = arith.constant 0.000000e+00 : f32
      %227 = vector.broadcast %cst_72 : f32 to vector<8x32xf32>
      %c0_73 = arith.constant 0 : index
      %c0_74 = arith.constant 0 : index
      %228 = vector.load %arg9[%c0_73, %c0_74] : memref<8x32xf32, #tpu.memory_space<vmem>>, vector<8x32xf32>
      tpu.vector_store %arg9[%c0_73, %c0_74], %227 {strides = array<i32>} : memref<8x32xf32, #tpu.memory_space<vmem>>, vector<8x32xf32>,
    } else {
    }
    %c0 = arith.constant 0 : index
    %c0_1 = arith.constant 0 : index
    %c0_2 = arith.constant 0 : index
    %3 = vector.load %arg2[%c0, %c0_1, %c0_2] : memref<8x8x8xf32, #tpu.memory_space<vmem>>, vector<8x8x8xf32>
    %4 = vector.shape_cast %3 : vector<8x8x8xf32> to vector<64x8xf32>
    %c0_3 = arith.constant 0 : index
    %c0_4 = arith.constant 0 : index
    %5 = vector.load %arg3[%c0_3, %c0_4] : memref<8x128xf32, #tpu.memory_space<vmem>>, vector<8x128xf32>
    %cst = arith.constant dense<0.000000e+00> : vector<64x128xf32>
    %6 = tpu.matmul %4, %5, %cst {dimension_numbers = #tpu.dot_dimension_numbers<[1], [0], [0], [1], [0, 0, 1, 1], [], []>} : vector<64x8xf32>, vector<8x128xf32>, vector<64x128xf32> -> vector<64x128xf32>
    %c0_5 = arith.constant 0 : index
    %c0_6 = arith.constant 0 : index
    %7 = vector.load %arg4[%c0_5, %c0_6] : memref<1x128xf32, #tpu.memory_space<vmem>>, vector<1x128xf32>
    %8 = vector.broadcast %7 : vector<1x128xf32> to vector<64x128xf32>
    %9 = arith.addf %6, %8 : vector<64x128xf32>
    %10 = vector.shape_cast %9 : vector<64x128xf32> to vector<8x8x128xf32>
    %c0_7 = arith.constant 0 : index
    %c0_8 = arith.constant 0 : index
    %c0_9 = arith.constant 0 : index
    %11 = vector.load %arg7[%c0_7, %c0_8, %c0_9] : memref<8x8x128xf32, #tpu.memory_space<vmem>>, vector<8x8x128xf32>
    tpu.vector_store %arg7[%c0_7, %c0_8, %c0_9], %10 {strides = array<i32>} : memref<8x8x128xf32, #tpu.memory_space<vmem>>, vector<8x8x128xf32>,
    %c0_10 = arith.constant 0 : index
    %c0_11 = arith.constant 0 : index
    %12 = vector.load %arg5[%c0_10, %c0_11] : memref<32x128xf32, #tpu.memory_space<vmem>>, vector<32x128xf32>
    %c0_12 = arith.constant 0 : index
    %c0_13 = arith.constant 0 : index
    %13 = vector.load %arg8[%c0_12, %c0_13] : memref<8x32xf32, #tpu.memory_space<vmem>>, vector<8x32xf32>
    %c0_14 = arith.constant 0 : index
    %c0_15 = arith.constant 0 : index
    %14 = vector.load %arg9[%c0_14, %c0_15] : memref<8x32xf32, #tpu.memory_space<vmem>>, vector<8x32xf32>
    %c0_i32_16 = arith.constant 0 : i32
    %15 = arith.index_cast %c0_i32_16 : i32 to index
    %c0_17 = arith.constant 0 : index
    %c0_18 = arith.constant 0 : index
    %16 = vector.load %arg7[%15, %c0_17, %c0_18] : memref<8x8x128xf32, #tpu.memory_space<vmem>>, vector<1x8x128xf32>
    %17 = vector.shape_cast %16 : vector<1x8x128xf32> to vector<8x128xf32>
    %cst_19 = arith.constant dense<0.000000e+00> : vector<8x128xf32>
    %18 = tpu.matmul %13, %12, %cst_19 {dimension_numbers = #tpu.dot_dimension_numbers<[1], [0], [0], [1], [0, 0, 1, 1], [], []>} : vector<8x32xf32>, vector<32x128xf32>, vector<8x128xf32> -> vector<8x128xf32>
    %19 = arith.addf %17, %18 : vector<8x128xf32>
    %20 = vector.extract_strided_slice %19 {offsets = [0, 0], sizes = [8, 96], strides = [1, 1]} : vector<8x128xf32> to vector<8x96xf32>
    %21 = arith.negf %20 : vector<8x96xf32>
    %22 = math.exp %21 : vector<8x96xf32>
    %cst_20 = arith.constant 1.000000e+00 : f32
    %23 = vector.broadcast %cst_20 : f32 to vector<8x96xf32>
    %24 = arith.addf %23, %22 : vector<8x96xf32>
    %25 = arith.divf %23, %24 : vector<8x96xf32>
    %26 = vector.extract_strided_slice %19 {offsets = [0, 96], sizes = [8, 32], strides = [1, 1]} : vector<8x128xf32> to vector<8x32xf32>
    %27 = math.tanh %26 : vector<8x32xf32>
    %28 = vector.extract_strided_slice %25 {offsets = [0, 0], sizes = [8, 32], strides = [1, 1]} : vector<8x96xf32> to vector<8x32xf32>
    %29 = vector.extract_strided_slice %25 {offsets = [0, 32], sizes = [8, 32], strides = [1, 1]} : vector<8x96xf32> to vector<8x32xf32>
    %30 = vector.extract_strided_slice %25 {offsets = [0, 64], sizes = [8, 32], strides = [1, 1]} : vector<8x96xf32> to vector<8x32xf32>
    %31 = arith.mulf %29, %14 : vector<8x32xf32>
    %32 = arith.mulf %28, %27 : vector<8x32xf32>
    %33 = arith.addf %31, %32 : vector<8x32xf32>
    %34 = math.tanh %33 : vector<8x32xf32>
    %35 = arith.mulf %30, %34 : vector<8x32xf32>
    %36 = arith.truncf %35 : vector<8x32xf32> to vector<8x32xbf16>
    %37 = arith.index_cast %c0_i32_16 : i32 to index
    %c0_21 = arith.constant 0 : index
    %c0_22 = arith.constant 0 : index
    %38 = vector.load %arg6[%37, %c0_21, %c0_22] : memref<8x8x32xbf16, #tpu.memory_space<vmem>>, vector<1x8x32xbf16>
    %39 = vector.shape_cast %38 : vector<1x8x32xbf16> to vector<8x32xbf16>
    %40 = vector.shape_cast %36 : vector<8x32xbf16> to vector<1x8x32xbf16>
    tpu.vector_store %arg6[%37, %c0_21, %c0_22], %40 {strides = array<i32>} : memref<8x8x32xbf16, #tpu.memory_space<vmem>>, vector<1x8x32xbf16>,
    %c1_i32 = arith.constant 1 : i32
    %41 = arith.index_cast %c1_i32 : i32 to index
    %c0_23 = arith.constant 0 : index
    %c0_24 = arith.constant 0 : index
    %42 = vector.load %arg7[%41, %c0_23, %c0_24] : memref<8x8x128xf32, #tpu.memory_space<vmem>>, vector<1x8x128xf32>
    %43 = vector.shape_cast %42 : vector<1x8x128xf32> to vector<8x128xf32>
    %cst_25 = arith.constant dense<0.000000e+00> : vector<8x128xf32>
    %44 = tpu.matmul %35, %12, %cst_25 {dimension_numbers = #tpu.dot_dimension_numbers<[1], [0], [0], [1], [0, 0, 1, 1], [], []>} : vector<8x32xf32>, vector<32x128xf32>, vector<8x128xf32> -> vector<8x128xf32>
    %45 = arith.addf %43, %44 : vector<8x128xf32>
    %46 = vector.extract_strided_slice %45 {offsets = [0, 0], sizes = [8, 96], strides = [1, 1]} : vector<8x128xf32> to vector<8x96xf32>
    %47 = arith.negf %46 : vector<8x96xf32>
    %48 = math.exp %47 : vector<8x96xf32>
    %cst_26 = arith.constant 1.000000e+00 : f32
    %49 = vector.broadcast %cst_26 : f32 to vector<8x96xf32>
    %50 = arith.addf %49, %48 : vector<8x96xf32>
    %51 = arith.divf %49, %50 : vector<8x96xf32>
    %52 = vector.extract_strided_slice %45 {offsets = [0, 96], sizes = [8, 32], strides = [1, 1]} : vector<8x128xf32> to vector<8x32xf32>
    %53 = math.tanh %52 : vector<8x32xf32>
    %54 = vector.extract_strided_slice %51 {offsets = [0, 0], sizes = [8, 32], strides = [1, 1]} : vector<8x96xf32> to vector<8x32xf32>
    %55 = vector.extract_strided_slice %51 {offsets = [0, 32], sizes = [8, 32], strides = [1, 1]} : vector<8x96xf32> to vector<8x32xf32>
    %56 = vector.extract_strided_slice %51 {offsets = [0, 64], sizes = [8, 32], strides = [1, 1]} : vector<8x96xf32> to vector<8x32xf32>
    %57 = arith.mulf %55, %33 : vector<8x32xf32>
    %58 = arith.mulf %54, %53 : vector<8x32xf32>
    %59 = arith.addf %57, %58 : vector<8x32xf32>
    %60 = math.tanh %59 : vector<8x32xf32>
    %61 = arith.mulf %56, %60 : vector<8x32xf32>
    %62 = arith.truncf %61 : vector<8x32xf32> to vector<8x32xbf16>
    %63 = arith.index_cast %c1_i32 : i32 to index
    %c0_27 = arith.constant 0 : index
    %c0_28 = arith.constant 0 : index
    %64 = vector.load %arg6[%63, %c0_27, %c0_28] : memref<8x8x32xbf16, #tpu.memory_space<vmem>>, vector<1x8x32xbf16>
    %65 = vector.shape_cast %64 : vector<1x8x32xbf16> to vector<8x32xbf16>
    %66 = vector.shape_cast %62 : vector<8x32xbf16> to vector<1x8x32xbf16>
    tpu.vector_store %arg6[%63, %c0_27, %c0_28], %66 {strides = array<i32>} : memref<8x8x32xbf16, #tpu.memory_space<vmem>>, vector<1x8x32xbf16>,
    %c2_i32 = arith.constant 2 : i32
    %67 = arith.index_cast %c2_i32 : i32 to index
    %c0_29 = arith.constant 0 : index
    %c0_30 = arith.constant 0 : index
    %68 = vector.load %arg7[%67, %c0_29, %c0_30] : memref<8x8x128xf32, #tpu.memory_space<vmem>>, vector<1x8x128xf32>
    %69 = vector.shape_cast %68 : vector<1x8x128xf32> to vector<8x128xf32>
    %cst_31 = arith.constant dense<0.000000e+00> : vector<8x128xf32>
    %70 = tpu.matmul %61, %12, %cst_31 {dimension_numbers = #tpu.dot_dimension_numbers<[1], [0], [0], [1], [0, 0, 1, 1], [], []>} : vector<8x32xf32>, vector<32x128xf32>, vector<8x128xf32> -> vector<8x128xf32>
    %71 = arith.addf %69, %70 : vector<8x128xf32>
    %72 = vector.extract_strided_slice %71 {offsets = [0, 0], sizes = [8, 96], strides = [1, 1]} : vector<8x128xf32> to vector<8x96xf32>
    %73 = arith.negf %72 : vector<8x96xf32>
    %74 = math.exp %73 : vector<8x96xf32>
    %cst_32 = arith.constant 1.000000e+00 : f32
    %75 = vector.broadcast %cst_32 : f32 to vector<8x96xf32>
    %76 = arith.addf %75, %74 : vector<8x96xf32>
    %77 = arith.divf %75, %76 : vector<8x96xf32>
    %78 = vector.extract_strided_slice %71 {offsets = [0, 96], sizes = [8, 32], strides = [1, 1]} : vector<8x128xf32> to vector<8x32xf32>
    %79 = math.tanh %78 : vector<8x32xf32>
    %80 = vector.extract_strided_slice %77 {offsets = [0, 0], sizes = [8, 32], strides = [1, 1]} : vector<8x96xf32> to vector<8x32xf32>
    %81 = vector.extract_strided_slice %77 {offsets = [0, 32], sizes = [8, 32], strides = [1, 1]} : vector<8x96xf32> to vector<8x32xf32>
    %82 = vector.extract_strided_slice %77 {offsets = [0, 64], sizes = [8, 32], strides = [1, 1]} : vector<8x96xf32> to vector<8x32xf32>
    %83 = arith.mulf %81, %59 : vector<8x32xf32>
    %84 = arith.mulf %80, %79 : vector<8x32xf32>
    %85 = arith.addf %83, %84 : vector<8x32xf32>
    %86 = math.tanh %85 : vector<8x32xf32>
    %87 = arith.mulf %82, %86 : vector<8x32xf32>
    %88 = arith.truncf %87 : vector<8x32xf32> to vector<8x32xbf16>
    %89 = arith.index_cast %c2_i32 : i32 to index
    %c0_33 = arith.constant 0 : index
    %c0_34 = arith.constant 0 : index
    %90 = vector.load %arg6[%89, %c0_33, %c0_34] : memref<8x8x32xbf16, #tpu.memory_space<vmem>>, vector<1x8x32xbf16>
    %91 = vector.shape_cast %90 : vector<1x8x32xbf16> to vector<8x32xbf16>
    %92 = vector.shape_cast %88 : vector<8x32xbf16> to vector<1x8x32xbf16>
    tpu.vector_store %arg6[%89, %c0_33, %c0_34], %92 {strides = array<i32>} : memref<8x8x32xbf16, #tpu.memory_space<vmem>>, vector<1x8x32xbf16>,
    %c3_i32 = arith.constant 3 : i32
    %93 = arith.index_cast %c3_i32 : i32 to index
    %c0_35 = arith.constant 0 : index
    %c0_36 = arith.constant 0 : index
    %94 = vector.load %arg7[%93, %c0_35, %c0_36] : memref<8x8x128xf32, #tpu.memory_space<vmem>>, vector<1x8x128xf32>
    %95 = vector.shape_cast %94 : vector<1x8x128xf32> to vector<8x128xf32>
    %cst_37 = arith.constant dense<0.000000e+00> : vector<8x128xf32>
    %96 = tpu.matmul %87, %12, %cst_37 {dimension_numbers = #tpu.dot_dimension_numbers<[1], [0], [0], [1], [0, 0, 1, 1], [], []>} : vector<8x32xf32>, vector<32x128xf32>, vector<8x128xf32> -> vector<8x128xf32>
    %97 = arith.addf %95, %96 : vector<8x128xf32>
    %98 = vector.extract_strided_slice %97 {offsets = [0, 0], sizes = [8, 96], strides = [1, 1]} : vector<8x128xf32> to vector<8x96xf32>
    %99 = arith.negf %98 : vector<8x96xf32>
    %100 = math.exp %99 : vector<8x96xf32>
    %cst_38 = arith.constant 1.000000e+00 : f32
    %101 = vector.broadcast %cst_38 : f32 to vector<8x96xf32>
    %102 = arith.addf %101, %100 : vector<8x96xf32>
    %103 = arith.divf %101, %102 : vector<8x96xf32>
    %104 = vector.extract_strided_slice %97 {offsets = [0, 96], sizes = [8, 32], strides = [1, 1]} : vector<8x128xf32> to vector<8x32xf32>
    %105 = math.tanh %104 : vector<8x32xf32>
    %106 = vector.extract_strided_slice %103 {offsets = [0, 0], sizes = [8, 32], strides = [1, 1]} : vector<8x96xf32> to vector<8x32xf32>
    %107 = vector.extract_strided_slice %103 {offsets = [0, 32], sizes = [8, 32], strides = [1, 1]} : vector<8x96xf32> to vector<8x32xf32>
    %108 = vector.extract_strided_slice %103 {offsets = [0, 64], sizes = [8, 32], strides = [1, 1]} : vector<8x96xf32> to vector<8x32xf32>
    %109 = arith.mulf %107, %85 : vector<8x32xf32>
    %110 = arith.mulf %106, %105 : vector<8x32xf32>
    %111 = arith.addf %109, %110 : vector<8x32xf32>
    %112 = math.tanh %111 : vector<8x32xf32>
    %113 = arith.mulf %108, %112 : vector<8x32xf32>
    %114 = arith.truncf %113 : vector<8x32xf32> to vector<8x32xbf16>
    %115 = arith.index_cast %c3_i32 : i32 to index
    %c0_39 = arith.constant 0 : index
    %c0_40 = arith.constant 0 : index
    %116 = vector.load %arg6[%115, %c0_39, %c0_40] : memref<8x8x32xbf16, #tpu.memory_space<vmem>>, vector<1x8x32xbf16>
    %117 = vector.shape_cast %116 : vector<1x8x32xbf16> to vector<8x32xbf16>
    %118 = vector.shape_cast %114 : vector<8x32xbf16> to vector<1x8x32xbf16>
    tpu.vector_store %arg6[%115, %c0_39, %c0_40], %118 {strides = array<i32>} : memref<8x8x32xbf16, #tpu.memory_space<vmem>>, vector<1x8x32xbf16>,
    %c4_i32 = arith.constant 4 : i32
    %119 = arith.index_cast %c4_i32 : i32 to index
    %c0_41 = arith.constant 0 : index
    %c0_42 = arith.constant 0 : index
    %120 = vector.load %arg7[%119, %c0_41, %c0_42] : memref<8x8x128xf32, #tpu.memory_space<vmem>>, vector<1x8x128xf32>
    %121 = vector.shape_cast %120 : vector<1x8x128xf32> to vector<8x128xf32>
    %cst_43 = arith.constant dense<0.000000e+00> : vector<8x128xf32>
    %122 = tpu.matmul %113, %12, %cst_43 {dimension_numbers = #tpu.dot_dimension_numbers<[1], [0], [0], [1], [0, 0, 1, 1], [], []>} : vector<8x32xf32>, vector<32x128xf32>, vector<8x128xf32> -> vector<8x128xf32>
    %123 = arith.addf %121, %122 : vector<8x128xf32>
    %124 = vector.extract_strided_slice %123 {offsets = [0, 0], sizes = [8, 96], strides = [1, 1]} : vector<8x128xf32> to vector<8x96xf32>
    %125 = arith.negf %124 : vector<8x96xf32>
    %126 = math.exp %125 : vector<8x96xf32>
    %cst_44 = arith.constant 1.000000e+00 : f32
    %127 = vector.broadcast %cst_44 : f32 to vector<8x96xf32>
    %128 = arith.addf %127, %126 : vector<8x96xf32>
    %129 = arith.divf %127, %128 : vector<8x96xf32>
    %130 = vector.extract_strided_slice %123 {offsets = [0, 96], sizes = [8, 32], strides = [1, 1]} : vector<8x128xf32> to vector<8x32xf32>
    %131 = math.tanh %130 : vector<8x32xf32>
    %132 = vector.extract_strided_slice %129 {offsets = [0, 0], sizes = [8, 32], strides = [1, 1]} : vector<8x96xf32> to vector<8x32xf32>
    %133 = vector.extract_strided_slice %129 {offsets = [0, 32], sizes = [8, 32], strides = [1, 1]} : vector<8x96xf32> to vector<8x32xf32>
    %134 = vector.extract_strided_slice %129 {offsets = [0, 64], sizes = [8, 32], strides = [1, 1]} : vector<8x96xf32> to vector<8x32xf32>
    %135 = arith.mulf %133, %111 : vector<8x32xf32>
    %136 = arith.mulf %132, %131 : vector<8x32xf32>
    %137 = arith.addf %135, %136 : vector<8x32xf32>
    %138 = math.tanh %137 : vector<8x32xf32>
    %139 = arith.mulf %134, %138 : vector<8x32xf32>
    %140 = arith.truncf %139 : vector<8x32xf32> to vector<8x32xbf16>
    %141 = arith.index_cast %c4_i32 : i32 to index
    %c0_45 = arith.constant 0 : index
    %c0_46 = arith.constant 0 : index
    %142 = vector.load %arg6[%141, %c0_45, %c0_46] : memref<8x8x32xbf16, #tpu.memory_space<vmem>>, vector<1x8x32xbf16>
    %143 = vector.shape_cast %142 : vector<1x8x32xbf16> to vector<8x32xbf16>
    %144 = vector.shape_cast %140 : vector<8x32xbf16> to vector<1x8x32xbf16>
    tpu.vector_store %arg6[%141, %c0_45, %c0_46], %144 {strides = array<i32>} : memref<8x8x32xbf16, #tpu.memory_space<vmem>>, vector<1x8x32xbf16>,
    %c5_i32 = arith.constant 5 : i32
    %145 = arith.index_cast %c5_i32 : i32 to index
    %c0_47 = arith.constant 0 : index
    %c0_48 = arith.constant 0 : index
    %146 = vector.load %arg7[%145, %c0_47, %c0_48] : memref<8x8x128xf32, #tpu.memory_space<vmem>>, vector<1x8x128xf32>
    %147 = vector.shape_cast %146 : vector<1x8x128xf32> to vector<8x128xf32>
    %cst_49 = arith.constant dense<0.000000e+00> : vector<8x128xf32>
    %148 = tpu.matmul %139, %12, %cst_49 {dimension_numbers = #tpu.dot_dimension_numbers<[1], [0], [0], [1], [0, 0, 1, 1], [], []>} : vector<8x32xf32>, vector<32x128xf32>, vector<8x128xf32> -> vector<8x128xf32>
    %149 = arith.addf %147, %148 : vector<8x128xf32>
    %150 = vector.extract_strided_slice %149 {offsets = [0, 0], sizes = [8, 96], strides = [1, 1]} : vector<8x128xf32> to vector<8x96xf32>
    %151 = arith.negf %150 : vector<8x96xf32>
    %152 = math.exp %151 : vector<8x96xf32>
    %cst_50 = arith.constant 1.000000e+00 : f32
    %153 = vector.broadcast %cst_50 : f32 to vector<8x96xf32>
    %154 = arith.addf %153, %152 : vector<8x96xf32>
    %155 = arith.divf %153, %154 : vector<8x96xf32>
    %156 = vector.extract_strided_slice %149 {offsets = [0, 96], sizes = [8, 32], strides = [1, 1]} : vector<8x128xf32> to vector<8x32xf32>
    %157 = math.tanh %156 : vector<8x32xf32>
    %158 = vector.extract_strided_slice %155 {offsets = [0, 0], sizes = [8, 32], strides = [1, 1]} : vector<8x96xf32> to vector<8x32xf32>
    %159 = vector.extract_strided_slice %155 {offsets = [0, 32], sizes = [8, 32], strides = [1, 1]} : vector<8x96xf32> to vector<8x32xf32>
    %160 = vector.extract_strided_slice %155 {offsets = [0, 64], sizes = [8, 32], strides = [1, 1]} : vector<8x96xf32> to vector<8x32xf32>
    %161 = arith.mulf %159, %137 : vector<8x32xf32>
    %162 = arith.mulf %158, %157 : vector<8x32xf32>
    %163 = arith.addf %161, %162 : vector<8x32xf32>
    %164 = math.tanh %163 : vector<8x32xf32>
    %165 = arith.mulf %160, %164 : vector<8x32xf32>
    %166 = arith.truncf %165 : vector<8x32xf32> to vector<8x32xbf16>
    %167 = arith.index_cast %c5_i32 : i32 to index
    %c0_51 = arith.constant 0 : index
    %c0_52 = arith.constant 0 : index
    %168 = vector.load %arg6[%167, %c0_51, %c0_52] : memref<8x8x32xbf16, #tpu.memory_space<vmem>>, vector<1x8x32xbf16>
    %169 = vector.shape_cast %168 : vector<1x8x32xbf16> to vector<8x32xbf16>
    %170 = vector.shape_cast %166 : vector<8x32xbf16> to vector<1x8x32xbf16>
    tpu.vector_store %arg6[%167, %c0_51, %c0_52], %170 {strides = array<i32>} : memref<8x8x32xbf16, #tpu.memory_space<vmem>>, vector<1x8x32xbf16>,
    %c6_i32 = arith.constant 6 : i32
    %171 = arith.index_cast %c6_i32 : i32 to index
    %c0_53 = arith.constant 0 : index
    %c0_54 = arith.constant 0 : index
    %172 = vector.load %arg7[%171, %c0_53, %c0_54] : memref<8x8x128xf32, #tpu.memory_space<vmem>>, vector<1x8x128xf32>
    %173 = vector.shape_cast %172 : vector<1x8x128xf32> to vector<8x128xf32>
    %cst_55 = arith.constant dense<0.000000e+00> : vector<8x128xf32>
    %174 = tpu.matmul %165, %12, %cst_55 {dimension_numbers = #tpu.dot_dimension_numbers<[1], [0], [0], [1], [0, 0, 1, 1], [], []>} : vector<8x32xf32>, vector<32x128xf32>, vector<8x128xf32> -> vector<8x128xf32>
    %175 = arith.addf %173, %174 : vector<8x128xf32>
    %176 = vector.extract_strided_slice %175 {offsets = [0, 0], sizes = [8, 96], strides = [1, 1]} : vector<8x128xf32> to vector<8x96xf32>
    %177 = arith.negf %176 : vector<8x96xf32>
    %178 = math.exp %177 : vector<8x96xf32>
    %cst_56 = arith.constant 1.000000e+00 : f32
    %179 = vector.broadcast %cst_56 : f32 to vector<8x96xf32>
    %180 = arith.addf %179, %178 : vector<8x96xf32>
    %181 = arith.divf %179, %180 : vector<8x96xf32>
    %182 = vector.extract_strided_slice %175 {offsets = [0, 96], sizes = [8, 32], strides = [1, 1]} : vector<8x128xf32> to vector<8x32xf32>
    %183 = math.tanh %182 : vector<8x32xf32>
    %184 = vector.extract_strided_slice %181 {offsets = [0, 0], sizes = [8, 32], strides = [1, 1]} : vector<8x96xf32> to vector<8x32xf32>
    %185 = vector.extract_strided_slice %181 {offsets = [0, 32], sizes = [8, 32], strides = [1, 1]} : vector<8x96xf32> to vector<8x32xf32>
    %186 = vector.extract_strided_slice %181 {offsets = [0, 64], sizes = [8, 32], strides = [1, 1]} : vector<8x96xf32> to vector<8x32xf32>
    %187 = arith.mulf %185, %163 : vector<8x32xf32>
    %188 = arith.mulf %184, %183 : vector<8x32xf32>
    %189 = arith.addf %187, %188 : vector<8x32xf32>
    %190 = math.tanh %189 : vector<8x32xf32>
    %191 = arith.mulf %186, %190 : vector<8x32xf32>
    %192 = arith.truncf %191 : vector<8x32xf32> to vector<8x32xbf16>
    %193 = arith.index_cast %c6_i32 : i32 to index
    %c0_57 = arith.constant 0 : index
    %c0_58 = arith.constant 0 : index
    %194 = vector.load %arg6[%193, %c0_57, %c0_58] : memref<8x8x32xbf16, #tpu.memory_space<vmem>>, vector<1x8x32xbf16>
    %195 = vector.shape_cast %194 : vector<1x8x32xbf16> to vector<8x32xbf16>
    %196 = vector.shape_cast %192 : vector<8x32xbf16> to vector<1x8x32xbf16>
    tpu.vector_store %arg6[%193, %c0_57, %c0_58], %196 {strides = array<i32>} : memref<8x8x32xbf16, #tpu.memory_space<vmem>>, vector<1x8x32xbf16>,
    %c7_i32 = arith.constant 7 : i32
    %197 = arith.index_cast %c7_i32 : i32 to index
    %c0_59 = arith.constant 0 : index
    %c0_60 = arith.constant 0 : index
    %198 = vector.load %arg7[%197, %c0_59, %c0_60] : memref<8x8x128xf32, #tpu.memory_space<vmem>>, vector<1x8x128xf32>
    %199 = vector.shape_cast %198 : vector<1x8x128xf32> to vector<8x128xf32>
    %cst_61 = arith.constant dense<0.000000e+00> : vector<8x128xf32>
    %200 = tpu.matmul %191, %12, %cst_61 {dimension_numbers = #tpu.dot_dimension_numbers<[1], [0], [0], [1], [0, 0, 1, 1], [], []>} : vector<8x32xf32>, vector<32x128xf32>, vector<8x128xf32> -> vector<8x128xf32>
    %201 = arith.addf %199, %200 : vector<8x128xf32>
    %202 = vector.extract_strided_slice %201 {offsets = [0, 0], sizes = [8, 96], strides = [1, 1]} : vector<8x128xf32> to vector<8x96xf32>
    %203 = arith.negf %202 : vector<8x96xf32>
    %204 = math.exp %203 : vector<8x96xf32>
    %cst_62 = arith.constant 1.000000e+00 : f32
    %205 = vector.broadcast %cst_62 : f32 to vector<8x96xf32>
    %206 = arith.addf %205, %204 : vector<8x96xf32>
    %207 = arith.divf %205, %206 : vector<8x96xf32>
    %208 = vector.extract_strided_slice %201 {offsets = [0, 96], sizes = [8, 32], strides = [1, 1]} : vector<8x128xf32> to vector<8x32xf32>
    %209 = math.tanh %208 : vector<8x32xf32>
    %210 = vector.extract_strided_slice %207 {offsets = [0, 0], sizes = [8, 32], strides = [1, 1]} : vector<8x96xf32> to vector<8x32xf32>
    %211 = vector.extract_strided_slice %207 {offsets = [0, 32], sizes = [8, 32], strides = [1, 1]} : vector<8x96xf32> to vector<8x32xf32>
    %212 = vector.extract_strided_slice %207 {offsets = [0, 64], sizes = [8, 32], strides = [1, 1]} : vector<8x96xf32> to vector<8x32xf32>
    %213 = arith.mulf %211, %189 : vector<8x32xf32>
    %214 = arith.mulf %210, %209 : vector<8x32xf32>
    %215 = arith.addf %213, %214 : vector<8x32xf32>
    %216 = math.tanh %215 : vector<8x32xf32>
    %217 = arith.mulf %212, %216 : vector<8x32xf32>
    %218 = arith.truncf %217 : vector<8x32xf32> to vector<8x32xbf16>
    %219 = arith.index_cast %c7_i32 : i32 to index
    %c0_63 = arith.constant 0 : index
    %c0_64 = arith.constant 0 : index
    %220 = vector.load %arg6[%219, %c0_63, %c0_64] : memref<8x8x32xbf16, #tpu.memory_space<vmem>>, vector<1x8x32xbf16>
    %221 = vector.shape_cast %220 : vector<1x8x32xbf16> to vector<8x32xbf16>
    %222 = vector.shape_cast %218 : vector<8x32xbf16> to vector<1x8x32xbf16>
    tpu.vector_store %arg6[%219, %c0_63, %c0_64], %222 {strides = array<i32>} : memref<8x8x32xbf16, #tpu.memory_space<vmem>>, vector<1x8x32xbf16>,
    %c8_i32 = arith.constant 8 : i32
    %c0_65 = arith.constant 0 : index
    %c0_66 = arith.constant 0 : index
    %223 = vector.load %arg8[%c0_65, %c0_66] : memref<8x32xf32, #tpu.memory_space<vmem>>, vector<8x32xf32>
    tpu.vector_store %arg8[%c0_65, %c0_66], %217 {strides = array<i32>} : memref<8x32xf32, #tpu.memory_space<vmem>>, vector<8x32xf32>,
    %c0_67 = arith.constant 0 : index
    %c0_68 = arith.constant 0 : index
    %224 = vector.load %arg9[%c0_67, %c0_68] : memref<8x32xf32, #tpu.memory_space<vmem>>, vector<8x32xf32>
    tpu.vector_store %arg9[%c0_67, %c0_68], %215 {strides = array<i32>} : memref<8x32xf32, #tpu.memory_space<vmem>>, vector<8x32xf32>,
    return
  }
  func.func @transform_0(%arg0: i32, %arg1: i32) -> (i32, i32, i32) {
    %c0_i32 = arith.constant 0 : i32
    %c0_i32_0 = arith.constant 0 : i32
    return %arg1, %arg0, %c0_i32 : i32, i32, i32
  }
  func.func @transform_1(%arg0: i32, %arg1: i32) -> (i32, i32) {
    %c0_i32 = arith.constant 0 : i32
    %c0_i32_0 = arith.constant 0 : i32
    %c0_i32_1 = arith.constant 0 : i32
    return %c0_i32, %c0_i32_0 : i32, i32
  }
  func.func @transform_2(%arg0: i32, %arg1: i32) -> (i32, i32) {
    %c0_i32 = arith.constant 0 : i32
    %c0_i32_0 = arith.constant 0 : i32
    %c0_i32_1 = arith.constant 0 : i32
    return %c0_i32, %c0_i32_0 : i32, i32
  }
  func.func @transform_3(%arg0: i32, %arg1: i32) -> (i32, i32) {
    %c0_i32 = arith.constant 0 : i32
    %c0_i32_0 = arith.constant 0 : i32
    %c0_i32_1 = arith.constant 0 : i32
    return %c0_i32, %c0_i32_0 : i32, i32
  }
  func.func @transform_4(%arg0: i32, %arg1: i32) -> (i32, i32, i32) {
    %c0_i32 = arith.constant 0 : i32
    %c0_i32_0 = arith.constant 0 : i32
    return %arg1, %arg0, %c0_i32 : i32, i32, i32
  }
}

module attributes {stable_mosaic.version = 11 : i64} {
  func.func @_lstm_last_fc_kernel(%arg0: i32, %arg1: i32, %arg2: memref<8x8x32xbf16, #tpu.memory_space<vmem>>, %arg3: memref<32x128xf32, #tpu.memory_space<vmem>>, %arg4: memref<1x128xf32, #tpu.memory_space<vmem>>, %arg5: memref<32x128xf32, #tpu.memory_space<vmem>>, %arg6: memref<32x16xf32, #tpu.memory_space<vmem>>, %arg7: memref<1x16xf32, #tpu.memory_space<vmem>>, %arg8: memref<1x16xf32, #tpu.memory_space<vmem>>, %arg9: memref<1x1xf32, #tpu.memory_space<vmem>>, %arg10: memref<8x1xf32, #tpu.memory_space<vmem>>, %arg11: memref<8x8x128xf32, #tpu.memory_space<vmem>>, %arg12: memref<8x32xf32, #tpu.memory_space<vmem>>, %arg13: memref<8x32xf32, #tpu.memory_space<vmem>>) attributes {dimension_semantics = [#tpu.dimension_semantics<parallel>, #tpu.dimension_semantics<arbitrary>], iteration_bounds = array<i64: 1, 1>, scalar_prefetch = 0 : i64, scratch_operands = 3 : i64, tpu.core_type = #tpu.core_type<tc>, window_params = [{transform_indices = @transform_0, window_bounds = array<i64: 8, 8, 32>}, {pipeline_mode = #tpu.pipeline_mode<synchronous>, transform_indices = @transform_1, window_bounds = array<i64: 32, 128>}, {pipeline_mode = #tpu.pipeline_mode<synchronous>, transform_indices = @transform_2, window_bounds = array<i64: 1, 128>}, {pipeline_mode = #tpu.pipeline_mode<synchronous>, transform_indices = @transform_3, window_bounds = array<i64: 32, 128>}, {pipeline_mode = #tpu.pipeline_mode<synchronous>, transform_indices = @transform_4, window_bounds = array<i64: 32, 16>}, {pipeline_mode = #tpu.pipeline_mode<synchronous>, transform_indices = @transform_5, window_bounds = array<i64: 1, 16>}, {pipeline_mode = #tpu.pipeline_mode<synchronous>, transform_indices = @transform_6, window_bounds = array<i64: 1, 16>}, {pipeline_mode = #tpu.pipeline_mode<synchronous>, transform_indices = @transform_7, window_bounds = array<i64: 1, 1>}, {transform_indices = @transform_8, window_bounds = array<i64: 8, 1>}]} {
    %c0_i32 = arith.constant 0 : i32
    %0 = arith.cmpi eq, %arg1, %c0_i32 : i32
    %1 = arith.extui %0 : i1 to i32
    %c0_i32_0 = arith.constant 0 : i32
    %2 = arith.cmpi ne, %1, %c0_i32_0 : i32
    scf.if %2 {
      %cst_55 = arith.constant 0.000000e+00 : f32
      %189 = vector.broadcast %cst_55 : f32 to vector<8x32xf32>
      %c0_56 = arith.constant 0 : index
      %c0_57 = arith.constant 0 : index
      %190 = vector.load %arg12[%c0_56, %c0_57] : memref<8x32xf32, #tpu.memory_space<vmem>>, vector<8x32xf32>
      tpu.vector_store %arg12[%c0_56, %c0_57], %189 {strides = array<i32>} : memref<8x32xf32, #tpu.memory_space<vmem>>, vector<8x32xf32>,
      %cst_58 = arith.constant 0.000000e+00 : f32
      %191 = vector.broadcast %cst_58 : f32 to vector<8x32xf32>
      %c0_59 = arith.constant 0 : index
      %c0_60 = arith.constant 0 : index
      %192 = vector.load %arg13[%c0_59, %c0_60] : memref<8x32xf32, #tpu.memory_space<vmem>>, vector<8x32xf32>
      tpu.vector_store %arg13[%c0_59, %c0_60], %191 {strides = array<i32>} : memref<8x32xf32, #tpu.memory_space<vmem>>, vector<8x32xf32>,
    } else {
    }
    %c0 = arith.constant 0 : index
    %c0_1 = arith.constant 0 : index
    %c0_2 = arith.constant 0 : index
    %3 = vector.load %arg2[%c0, %c0_1, %c0_2] : memref<8x8x32xbf16, #tpu.memory_space<vmem>>, vector<8x8x32xbf16>
    %4 = vector.shape_cast %3 : vector<8x8x32xbf16> to vector<64x32xbf16>
    %5 = arith.extf %4 : vector<64x32xbf16> to vector<64x32xf32>
    %c0_3 = arith.constant 0 : index
    %c0_4 = arith.constant 0 : index
    %6 = vector.load %arg3[%c0_3, %c0_4] : memref<32x128xf32, #tpu.memory_space<vmem>>, vector<32x128xf32>
    %cst = arith.constant dense<0.000000e+00> : vector<64x128xf32>
    %7 = tpu.matmul %5, %6, %cst {dimension_numbers = #tpu.dot_dimension_numbers<[1], [0], [0], [1], [0, 0, 1, 1], [], []>} : vector<64x32xf32>, vector<32x128xf32>, vector<64x128xf32> -> vector<64x128xf32>
    %c0_5 = arith.constant 0 : index
    %c0_6 = arith.constant 0 : index
    %8 = vector.load %arg4[%c0_5, %c0_6] : memref<1x128xf32, #tpu.memory_space<vmem>>, vector<1x128xf32>
    %9 = vector.broadcast %8 : vector<1x128xf32> to vector<64x128xf32>
    %10 = arith.addf %7, %9 : vector<64x128xf32>
    %11 = vector.shape_cast %10 : vector<64x128xf32> to vector<8x8x128xf32>
    %c0_7 = arith.constant 0 : index
    %c0_8 = arith.constant 0 : index
    %c0_9 = arith.constant 0 : index
    %12 = vector.load %arg11[%c0_7, %c0_8, %c0_9] : memref<8x8x128xf32, #tpu.memory_space<vmem>>, vector<8x8x128xf32>
    tpu.vector_store %arg11[%c0_7, %c0_8, %c0_9], %11 {strides = array<i32>} : memref<8x8x128xf32, #tpu.memory_space<vmem>>, vector<8x8x128xf32>,
    %c0_10 = arith.constant 0 : index
    %c0_11 = arith.constant 0 : index
    %13 = vector.load %arg5[%c0_10, %c0_11] : memref<32x128xf32, #tpu.memory_space<vmem>>, vector<32x128xf32>
    %c0_12 = arith.constant 0 : index
    %c0_13 = arith.constant 0 : index
    %14 = vector.load %arg12[%c0_12, %c0_13] : memref<8x32xf32, #tpu.memory_space<vmem>>, vector<8x32xf32>
    %c0_14 = arith.constant 0 : index
    %c0_15 = arith.constant 0 : index
    %15 = vector.load %arg13[%c0_14, %c0_15] : memref<8x32xf32, #tpu.memory_space<vmem>>, vector<8x32xf32>
    %c0_i32_16 = arith.constant 0 : i32
    %16 = arith.index_cast %c0_i32_16 : i32 to index
    %c0_17 = arith.constant 0 : index
    %c0_18 = arith.constant 0 : index
    %17 = vector.load %arg11[%16, %c0_17, %c0_18] : memref<8x8x128xf32, #tpu.memory_space<vmem>>, vector<1x8x128xf32>
    %18 = vector.shape_cast %17 : vector<1x8x128xf32> to vector<8x128xf32>
    %cst_19 = arith.constant dense<0.000000e+00> : vector<8x128xf32>
    %19 = tpu.matmul %14, %13, %cst_19 {dimension_numbers = #tpu.dot_dimension_numbers<[1], [0], [0], [1], [0, 0, 1, 1], [], []>} : vector<8x32xf32>, vector<32x128xf32>, vector<8x128xf32> -> vector<8x128xf32>
    %20 = arith.addf %18, %19 : vector<8x128xf32>
    %21 = vector.extract_strided_slice %20 {offsets = [0, 0], sizes = [8, 96], strides = [1, 1]} : vector<8x128xf32> to vector<8x96xf32>
    %22 = arith.negf %21 : vector<8x96xf32>
    %23 = math.exp %22 : vector<8x96xf32>
    %cst_20 = arith.constant 1.000000e+00 : f32
    %24 = vector.broadcast %cst_20 : f32 to vector<8x96xf32>
    %25 = arith.addf %24, %23 : vector<8x96xf32>
    %26 = arith.divf %24, %25 : vector<8x96xf32>
    %27 = vector.extract_strided_slice %20 {offsets = [0, 96], sizes = [8, 32], strides = [1, 1]} : vector<8x128xf32> to vector<8x32xf32>
    %28 = math.tanh %27 : vector<8x32xf32>
    %29 = vector.extract_strided_slice %26 {offsets = [0, 0], sizes = [8, 32], strides = [1, 1]} : vector<8x96xf32> to vector<8x32xf32>
    %30 = vector.extract_strided_slice %26 {offsets = [0, 32], sizes = [8, 32], strides = [1, 1]} : vector<8x96xf32> to vector<8x32xf32>
    %31 = vector.extract_strided_slice %26 {offsets = [0, 64], sizes = [8, 32], strides = [1, 1]} : vector<8x96xf32> to vector<8x32xf32>
    %32 = arith.mulf %30, %15 : vector<8x32xf32>
    %33 = arith.mulf %29, %28 : vector<8x32xf32>
    %34 = arith.addf %32, %33 : vector<8x32xf32>
    %35 = math.tanh %34 : vector<8x32xf32>
    %36 = arith.mulf %31, %35 : vector<8x32xf32>
    %c1_i32 = arith.constant 1 : i32
    %37 = arith.index_cast %c1_i32 : i32 to index
    %c0_21 = arith.constant 0 : index
    %c0_22 = arith.constant 0 : index
    %38 = vector.load %arg11[%37, %c0_21, %c0_22] : memref<8x8x128xf32, #tpu.memory_space<vmem>>, vector<1x8x128xf32>
    %39 = vector.shape_cast %38 : vector<1x8x128xf32> to vector<8x128xf32>
    %cst_23 = arith.constant dense<0.000000e+00> : vector<8x128xf32>
    %40 = tpu.matmul %36, %13, %cst_23 {dimension_numbers = #tpu.dot_dimension_numbers<[1], [0], [0], [1], [0, 0, 1, 1], [], []>} : vector<8x32xf32>, vector<32x128xf32>, vector<8x128xf32> -> vector<8x128xf32>
    %41 = arith.addf %39, %40 : vector<8x128xf32>
    %42 = vector.extract_strided_slice %41 {offsets = [0, 0], sizes = [8, 96], strides = [1, 1]} : vector<8x128xf32> to vector<8x96xf32>
    %43 = arith.negf %42 : vector<8x96xf32>
    %44 = math.exp %43 : vector<8x96xf32>
    %cst_24 = arith.constant 1.000000e+00 : f32
    %45 = vector.broadcast %cst_24 : f32 to vector<8x96xf32>
    %46 = arith.addf %45, %44 : vector<8x96xf32>
    %47 = arith.divf %45, %46 : vector<8x96xf32>
    %48 = vector.extract_strided_slice %41 {offsets = [0, 96], sizes = [8, 32], strides = [1, 1]} : vector<8x128xf32> to vector<8x32xf32>
    %49 = math.tanh %48 : vector<8x32xf32>
    %50 = vector.extract_strided_slice %47 {offsets = [0, 0], sizes = [8, 32], strides = [1, 1]} : vector<8x96xf32> to vector<8x32xf32>
    %51 = vector.extract_strided_slice %47 {offsets = [0, 32], sizes = [8, 32], strides = [1, 1]} : vector<8x96xf32> to vector<8x32xf32>
    %52 = vector.extract_strided_slice %47 {offsets = [0, 64], sizes = [8, 32], strides = [1, 1]} : vector<8x96xf32> to vector<8x32xf32>
    %53 = arith.mulf %51, %34 : vector<8x32xf32>
    %54 = arith.mulf %50, %49 : vector<8x32xf32>
    %55 = arith.addf %53, %54 : vector<8x32xf32>
    %56 = math.tanh %55 : vector<8x32xf32>
    %57 = arith.mulf %52, %56 : vector<8x32xf32>
    %c2_i32 = arith.constant 2 : i32
    %58 = arith.index_cast %c2_i32 : i32 to index
    %c0_25 = arith.constant 0 : index
    %c0_26 = arith.constant 0 : index
    %59 = vector.load %arg11[%58, %c0_25, %c0_26] : memref<8x8x128xf32, #tpu.memory_space<vmem>>, vector<1x8x128xf32>
    %60 = vector.shape_cast %59 : vector<1x8x128xf32> to vector<8x128xf32>
    %cst_27 = arith.constant dense<0.000000e+00> : vector<8x128xf32>
    %61 = tpu.matmul %57, %13, %cst_27 {dimension_numbers = #tpu.dot_dimension_numbers<[1], [0], [0], [1], [0, 0, 1, 1], [], []>} : vector<8x32xf32>, vector<32x128xf32>, vector<8x128xf32> -> vector<8x128xf32>
    %62 = arith.addf %60, %61 : vector<8x128xf32>
    %63 = vector.extract_strided_slice %62 {offsets = [0, 0], sizes = [8, 96], strides = [1, 1]} : vector<8x128xf32> to vector<8x96xf32>
    %64 = arith.negf %63 : vector<8x96xf32>
    %65 = math.exp %64 : vector<8x96xf32>
    %cst_28 = arith.constant 1.000000e+00 : f32
    %66 = vector.broadcast %cst_28 : f32 to vector<8x96xf32>
    %67 = arith.addf %66, %65 : vector<8x96xf32>
    %68 = arith.divf %66, %67 : vector<8x96xf32>
    %69 = vector.extract_strided_slice %62 {offsets = [0, 96], sizes = [8, 32], strides = [1, 1]} : vector<8x128xf32> to vector<8x32xf32>
    %70 = math.tanh %69 : vector<8x32xf32>
    %71 = vector.extract_strided_slice %68 {offsets = [0, 0], sizes = [8, 32], strides = [1, 1]} : vector<8x96xf32> to vector<8x32xf32>
    %72 = vector.extract_strided_slice %68 {offsets = [0, 32], sizes = [8, 32], strides = [1, 1]} : vector<8x96xf32> to vector<8x32xf32>
    %73 = vector.extract_strided_slice %68 {offsets = [0, 64], sizes = [8, 32], strides = [1, 1]} : vector<8x96xf32> to vector<8x32xf32>
    %74 = arith.mulf %72, %55 : vector<8x32xf32>
    %75 = arith.mulf %71, %70 : vector<8x32xf32>
    %76 = arith.addf %74, %75 : vector<8x32xf32>
    %77 = math.tanh %76 : vector<8x32xf32>
    %78 = arith.mulf %73, %77 : vector<8x32xf32>
    %c3_i32 = arith.constant 3 : i32
    %79 = arith.index_cast %c3_i32 : i32 to index
    %c0_29 = arith.constant 0 : index
    %c0_30 = arith.constant 0 : index
    %80 = vector.load %arg11[%79, %c0_29, %c0_30] : memref<8x8x128xf32, #tpu.memory_space<vmem>>, vector<1x8x128xf32>
    %81 = vector.shape_cast %80 : vector<1x8x128xf32> to vector<8x128xf32>
    %cst_31 = arith.constant dense<0.000000e+00> : vector<8x128xf32>
    %82 = tpu.matmul %78, %13, %cst_31 {dimension_numbers = #tpu.dot_dimension_numbers<[1], [0], [0], [1], [0, 0, 1, 1], [], []>} : vector<8x32xf32>, vector<32x128xf32>, vector<8x128xf32> -> vector<8x128xf32>
    %83 = arith.addf %81, %82 : vector<8x128xf32>
    %84 = vector.extract_strided_slice %83 {offsets = [0, 0], sizes = [8, 96], strides = [1, 1]} : vector<8x128xf32> to vector<8x96xf32>
    %85 = arith.negf %84 : vector<8x96xf32>
    %86 = math.exp %85 : vector<8x96xf32>
    %cst_32 = arith.constant 1.000000e+00 : f32
    %87 = vector.broadcast %cst_32 : f32 to vector<8x96xf32>
    %88 = arith.addf %87, %86 : vector<8x96xf32>
    %89 = arith.divf %87, %88 : vector<8x96xf32>
    %90 = vector.extract_strided_slice %83 {offsets = [0, 96], sizes = [8, 32], strides = [1, 1]} : vector<8x128xf32> to vector<8x32xf32>
    %91 = math.tanh %90 : vector<8x32xf32>
    %92 = vector.extract_strided_slice %89 {offsets = [0, 0], sizes = [8, 32], strides = [1, 1]} : vector<8x96xf32> to vector<8x32xf32>
    %93 = vector.extract_strided_slice %89 {offsets = [0, 32], sizes = [8, 32], strides = [1, 1]} : vector<8x96xf32> to vector<8x32xf32>
    %94 = vector.extract_strided_slice %89 {offsets = [0, 64], sizes = [8, 32], strides = [1, 1]} : vector<8x96xf32> to vector<8x32xf32>
    %95 = arith.mulf %93, %76 : vector<8x32xf32>
    %96 = arith.mulf %92, %91 : vector<8x32xf32>
    %97 = arith.addf %95, %96 : vector<8x32xf32>
    %98 = math.tanh %97 : vector<8x32xf32>
    %99 = arith.mulf %94, %98 : vector<8x32xf32>
    %c4_i32 = arith.constant 4 : i32
    %100 = arith.index_cast %c4_i32 : i32 to index
    %c0_33 = arith.constant 0 : index
    %c0_34 = arith.constant 0 : index
    %101 = vector.load %arg11[%100, %c0_33, %c0_34] : memref<8x8x128xf32, #tpu.memory_space<vmem>>, vector<1x8x128xf32>
    %102 = vector.shape_cast %101 : vector<1x8x128xf32> to vector<8x128xf32>
    %cst_35 = arith.constant dense<0.000000e+00> : vector<8x128xf32>
    %103 = tpu.matmul %99, %13, %cst_35 {dimension_numbers = #tpu.dot_dimension_numbers<[1], [0], [0], [1], [0, 0, 1, 1], [], []>} : vector<8x32xf32>, vector<32x128xf32>, vector<8x128xf32> -> vector<8x128xf32>
    %104 = arith.addf %102, %103 : vector<8x128xf32>
    %105 = vector.extract_strided_slice %104 {offsets = [0, 0], sizes = [8, 96], strides = [1, 1]} : vector<8x128xf32> to vector<8x96xf32>
    %106 = arith.negf %105 : vector<8x96xf32>
    %107 = math.exp %106 : vector<8x96xf32>
    %cst_36 = arith.constant 1.000000e+00 : f32
    %108 = vector.broadcast %cst_36 : f32 to vector<8x96xf32>
    %109 = arith.addf %108, %107 : vector<8x96xf32>
    %110 = arith.divf %108, %109 : vector<8x96xf32>
    %111 = vector.extract_strided_slice %104 {offsets = [0, 96], sizes = [8, 32], strides = [1, 1]} : vector<8x128xf32> to vector<8x32xf32>
    %112 = math.tanh %111 : vector<8x32xf32>
    %113 = vector.extract_strided_slice %110 {offsets = [0, 0], sizes = [8, 32], strides = [1, 1]} : vector<8x96xf32> to vector<8x32xf32>
    %114 = vector.extract_strided_slice %110 {offsets = [0, 32], sizes = [8, 32], strides = [1, 1]} : vector<8x96xf32> to vector<8x32xf32>
    %115 = vector.extract_strided_slice %110 {offsets = [0, 64], sizes = [8, 32], strides = [1, 1]} : vector<8x96xf32> to vector<8x32xf32>
    %116 = arith.mulf %114, %97 : vector<8x32xf32>
    %117 = arith.mulf %113, %112 : vector<8x32xf32>
    %118 = arith.addf %116, %117 : vector<8x32xf32>
    %119 = math.tanh %118 : vector<8x32xf32>
    %120 = arith.mulf %115, %119 : vector<8x32xf32>
    %c5_i32 = arith.constant 5 : i32
    %121 = arith.index_cast %c5_i32 : i32 to index
    %c0_37 = arith.constant 0 : index
    %c0_38 = arith.constant 0 : index
    %122 = vector.load %arg11[%121, %c0_37, %c0_38] : memref<8x8x128xf32, #tpu.memory_space<vmem>>, vector<1x8x128xf32>
    %123 = vector.shape_cast %122 : vector<1x8x128xf32> to vector<8x128xf32>
    %cst_39 = arith.constant dense<0.000000e+00> : vector<8x128xf32>
    %124 = tpu.matmul %120, %13, %cst_39 {dimension_numbers = #tpu.dot_dimension_numbers<[1], [0], [0], [1], [0, 0, 1, 1], [], []>} : vector<8x32xf32>, vector<32x128xf32>, vector<8x128xf32> -> vector<8x128xf32>
    %125 = arith.addf %123, %124 : vector<8x128xf32>
    %126 = vector.extract_strided_slice %125 {offsets = [0, 0], sizes = [8, 96], strides = [1, 1]} : vector<8x128xf32> to vector<8x96xf32>
    %127 = arith.negf %126 : vector<8x96xf32>
    %128 = math.exp %127 : vector<8x96xf32>
    %cst_40 = arith.constant 1.000000e+00 : f32
    %129 = vector.broadcast %cst_40 : f32 to vector<8x96xf32>
    %130 = arith.addf %129, %128 : vector<8x96xf32>
    %131 = arith.divf %129, %130 : vector<8x96xf32>
    %132 = vector.extract_strided_slice %125 {offsets = [0, 96], sizes = [8, 32], strides = [1, 1]} : vector<8x128xf32> to vector<8x32xf32>
    %133 = math.tanh %132 : vector<8x32xf32>
    %134 = vector.extract_strided_slice %131 {offsets = [0, 0], sizes = [8, 32], strides = [1, 1]} : vector<8x96xf32> to vector<8x32xf32>
    %135 = vector.extract_strided_slice %131 {offsets = [0, 32], sizes = [8, 32], strides = [1, 1]} : vector<8x96xf32> to vector<8x32xf32>
    %136 = vector.extract_strided_slice %131 {offsets = [0, 64], sizes = [8, 32], strides = [1, 1]} : vector<8x96xf32> to vector<8x32xf32>
    %137 = arith.mulf %135, %118 : vector<8x32xf32>
    %138 = arith.mulf %134, %133 : vector<8x32xf32>
    %139 = arith.addf %137, %138 : vector<8x32xf32>
    %140 = math.tanh %139 : vector<8x32xf32>
    %141 = arith.mulf %136, %140 : vector<8x32xf32>
    %c6_i32 = arith.constant 6 : i32
    %142 = arith.index_cast %c6_i32 : i32 to index
    %c0_41 = arith.constant 0 : index
    %c0_42 = arith.constant 0 : index
    %143 = vector.load %arg11[%142, %c0_41, %c0_42] : memref<8x8x128xf32, #tpu.memory_space<vmem>>, vector<1x8x128xf32>
    %144 = vector.shape_cast %143 : vector<1x8x128xf32> to vector<8x128xf32>
    %cst_43 = arith.constant dense<0.000000e+00> : vector<8x128xf32>
    %145 = tpu.matmul %141, %13, %cst_43 {dimension_numbers = #tpu.dot_dimension_numbers<[1], [0], [0], [1], [0, 0, 1, 1], [], []>} : vector<8x32xf32>, vector<32x128xf32>, vector<8x128xf32> -> vector<8x128xf32>
    %146 = arith.addf %144, %145 : vector<8x128xf32>
    %147 = vector.extract_strided_slice %146 {offsets = [0, 0], sizes = [8, 96], strides = [1, 1]} : vector<8x128xf32> to vector<8x96xf32>
    %148 = arith.negf %147 : vector<8x96xf32>
    %149 = math.exp %148 : vector<8x96xf32>
    %cst_44 = arith.constant 1.000000e+00 : f32
    %150 = vector.broadcast %cst_44 : f32 to vector<8x96xf32>
    %151 = arith.addf %150, %149 : vector<8x96xf32>
    %152 = arith.divf %150, %151 : vector<8x96xf32>
    %153 = vector.extract_strided_slice %146 {offsets = [0, 96], sizes = [8, 32], strides = [1, 1]} : vector<8x128xf32> to vector<8x32xf32>
    %154 = math.tanh %153 : vector<8x32xf32>
    %155 = vector.extract_strided_slice %152 {offsets = [0, 0], sizes = [8, 32], strides = [1, 1]} : vector<8x96xf32> to vector<8x32xf32>
    %156 = vector.extract_strided_slice %152 {offsets = [0, 32], sizes = [8, 32], strides = [1, 1]} : vector<8x96xf32> to vector<8x32xf32>
    %157 = vector.extract_strided_slice %152 {offsets = [0, 64], sizes = [8, 32], strides = [1, 1]} : vector<8x96xf32> to vector<8x32xf32>
    %158 = arith.mulf %156, %139 : vector<8x32xf32>
    %159 = arith.mulf %155, %154 : vector<8x32xf32>
    %160 = arith.addf %158, %159 : vector<8x32xf32>
    %161 = math.tanh %160 : vector<8x32xf32>
    %162 = arith.mulf %157, %161 : vector<8x32xf32>
    %c7_i32 = arith.constant 7 : i32
    %163 = arith.index_cast %c7_i32 : i32 to index
    %c0_45 = arith.constant 0 : index
    %c0_46 = arith.constant 0 : index
    %164 = vector.load %arg11[%163, %c0_45, %c0_46] : memref<8x8x128xf32, #tpu.memory_space<vmem>>, vector<1x8x128xf32>
    %165 = vector.shape_cast %164 : vector<1x8x128xf32> to vector<8x128xf32>
    %cst_47 = arith.constant dense<0.000000e+00> : vector<8x128xf32>
    %166 = tpu.matmul %162, %13, %cst_47 {dimension_numbers = #tpu.dot_dimension_numbers<[1], [0], [0], [1], [0, 0, 1, 1], [], []>} : vector<8x32xf32>, vector<32x128xf32>, vector<8x128xf32> -> vector<8x128xf32>
    %167 = arith.addf %165, %166 : vector<8x128xf32>
    %168 = vector.extract_strided_slice %167 {offsets = [0, 0], sizes = [8, 96], strides = [1, 1]} : vector<8x128xf32> to vector<8x96xf32>
    %169 = arith.negf %168 : vector<8x96xf32>
    %170 = math.exp %169 : vector<8x96xf32>
    %cst_48 = arith.constant 1.000000e+00 : f32
    %171 = vector.broadcast %cst_48 : f32 to vector<8x96xf32>
    %172 = arith.addf %171, %170 : vector<8x96xf32>
    %173 = arith.divf %171, %172 : vector<8x96xf32>
    %174 = vector.extract_strided_slice %167 {offsets = [0, 96], sizes = [8, 32], strides = [1, 1]} : vector<8x128xf32> to vector<8x32xf32>
    %175 = math.tanh %174 : vector<8x32xf32>
    %176 = vector.extract_strided_slice %173 {offsets = [0, 0], sizes = [8, 32], strides = [1, 1]} : vector<8x96xf32> to vector<8x32xf32>
    %177 = vector.extract_strided_slice %173 {offsets = [0, 32], sizes = [8, 32], strides = [1, 1]} : vector<8x96xf32> to vector<8x32xf32>
    %178 = vector.extract_strided_slice %173 {offsets = [0, 64], sizes = [8, 32], strides = [1, 1]} : vector<8x96xf32> to vector<8x32xf32>
    %179 = arith.mulf %177, %160 : vector<8x32xf32>
    %180 = arith.mulf %176, %175 : vector<8x32xf32>
    %181 = arith.addf %179, %180 : vector<8x32xf32>
    %182 = math.tanh %181 : vector<8x32xf32>
    %183 = arith.mulf %178, %182 : vector<8x32xf32>
    %c8_i32 = arith.constant 8 : i32
    %c0_49 = arith.constant 0 : index
    %c0_50 = arith.constant 0 : index
    %184 = vector.load %arg12[%c0_49, %c0_50] : memref<8x32xf32, #tpu.memory_space<vmem>>, vector<8x32xf32>
    tpu.vector_store %arg12[%c0_49, %c0_50], %183 {strides = array<i32>} : memref<8x32xf32, #tpu.memory_space<vmem>>, vector<8x32xf32>,
    %c0_51 = arith.constant 0 : index
    %c0_52 = arith.constant 0 : index
    %185 = vector.load %arg13[%c0_51, %c0_52] : memref<8x32xf32, #tpu.memory_space<vmem>>, vector<8x32xf32>
    tpu.vector_store %arg13[%c0_51, %c0_52], %181 {strides = array<i32>} : memref<8x32xf32, #tpu.memory_space<vmem>>, vector<8x32xf32>,
    %c0_i32_53 = arith.constant 0 : i32
    %186 = arith.cmpi eq, %arg1, %c0_i32_53 : i32
    %187 = arith.extui %186 : i1 to i32
    %c0_i32_54 = arith.constant 0 : i32
    %188 = arith.cmpi ne, %187, %c0_i32_54 : i32
    scf.if %188 {
      %c0_55 = arith.constant 0 : index
      %c0_56 = arith.constant 0 : index
      %189 = vector.load %arg6[%c0_55, %c0_56] : memref<32x16xf32, #tpu.memory_space<vmem>>, vector<32x16xf32>
      %cst_57 = arith.constant dense<0.000000e+00> : vector<8x16xf32>
      %190 = tpu.matmul %183, %189, %cst_57 {dimension_numbers = #tpu.dot_dimension_numbers<[1], [0], [0], [1], [0, 0, 1, 1], [], []>} : vector<8x32xf32>, vector<32x16xf32>, vector<8x16xf32> -> vector<8x16xf32>
      %c0_58 = arith.constant 0 : index
      %c0_59 = arith.constant 0 : index
      %191 = vector.load %arg7[%c0_58, %c0_59] : memref<1x16xf32, #tpu.memory_space<vmem>>, vector<1x16xf32>
      %192 = vector.broadcast %191 : vector<1x16xf32> to vector<8x16xf32>
      %193 = arith.addf %190, %192 : vector<8x16xf32>
      %cst_60 = arith.constant 0.000000e+00 : f32
      %194 = vector.broadcast %cst_60 : f32 to vector<8x16xf32>
      %195 = arith.maximumf %193, %194 : vector<8x16xf32>
      %c0_61 = arith.constant 0 : index
      %c0_62 = arith.constant 0 : index
      %196 = vector.load %arg8[%c0_61, %c0_62] : memref<1x16xf32, #tpu.memory_space<vmem>>, vector<1x16xf32>
      %197 = vector.broadcast %196 : vector<1x16xf32> to vector<8x16xf32>
      %198 = arith.mulf %195, %197 : vector<8x16xf32>
      %cst_63 = arith.constant dense<0.000000e+00> : vector<8xf32>
      %199 = vector.multi_reduction <add>, %198, %cst_63 [1] : vector<8x16xf32> to vector<8xf32>
      %200 = vector.shape_cast %199 : vector<8xf32> to vector<8x1xf32>
      %c0_64 = arith.constant 0 : index
      %c0_65 = arith.constant 0 : index
      %201 = vector.load %arg9[%c0_64, %c0_65] : memref<1x1xf32, #tpu.memory_space<vmem>>, vector<1x1xf32>
      %202 = vector.broadcast %201 : vector<1x1xf32> to vector<8x1xf32>
      %203 = arith.addf %200, %202 : vector<8x1xf32>
      %c0_66 = arith.constant 0 : index
      %c0_67 = arith.constant 0 : index
      %204 = vector.load %arg10[%c0_66, %c0_67] : memref<8x1xf32, #tpu.memory_space<vmem>>, vector<8x1xf32>
      tpu.vector_store %arg10[%c0_66, %c0_67], %203 {strides = array<i32>} : memref<8x1xf32, #tpu.memory_space<vmem>>, vector<8x1xf32>,
    } else {
    }
    return
  }
  func.func @transform_0(%arg0: i32, %arg1: i32) -> (i32, i32, i32) {
    %c0_i32 = arith.constant 0 : i32
    %c0_i32_0 = arith.constant 0 : i32
    return %arg1, %arg0, %c0_i32 : i32, i32, i32
  }
  func.func @transform_1(%arg0: i32, %arg1: i32) -> (i32, i32) {
    %c0_i32 = arith.constant 0 : i32
    %c0_i32_0 = arith.constant 0 : i32
    %c0_i32_1 = arith.constant 0 : i32
    return %c0_i32, %c0_i32_0 : i32, i32
  }
  func.func @transform_2(%arg0: i32, %arg1: i32) -> (i32, i32) {
    %c0_i32 = arith.constant 0 : i32
    %c0_i32_0 = arith.constant 0 : i32
    %c0_i32_1 = arith.constant 0 : i32
    return %c0_i32, %c0_i32_0 : i32, i32
  }
  func.func @transform_3(%arg0: i32, %arg1: i32) -> (i32, i32) {
    %c0_i32 = arith.constant 0 : i32
    %c0_i32_0 = arith.constant 0 : i32
    %c0_i32_1 = arith.constant 0 : i32
    return %c0_i32, %c0_i32_0 : i32, i32
  }
  func.func @transform_4(%arg0: i32, %arg1: i32) -> (i32, i32) {
    %c0_i32 = arith.constant 0 : i32
    %c0_i32_0 = arith.constant 0 : i32
    %c0_i32_1 = arith.constant 0 : i32
    return %c0_i32, %c0_i32_0 : i32, i32
  }
  func.func @transform_5(%arg0: i32, %arg1: i32) -> (i32, i32) {
    %c0_i32 = arith.constant 0 : i32
    %c0_i32_0 = arith.constant 0 : i32
    %c0_i32_1 = arith.constant 0 : i32
    return %c0_i32, %c0_i32_0 : i32, i32
  }
  func.func @transform_6(%arg0: i32, %arg1: i32) -> (i32, i32) {
    %c0_i32 = arith.constant 0 : i32
    %c0_i32_0 = arith.constant 0 : i32
    %c0_i32_1 = arith.constant 0 : i32
    return %c0_i32, %c0_i32_0 : i32, i32
  }
  func.func @transform_7(%arg0: i32, %arg1: i32) -> (i32, i32) {
    %c0_i32 = arith.constant 0 : i32
    %c0_i32_0 = arith.constant 0 : i32
    %c0_i32_1 = arith.constant 0 : i32
    return %c0_i32, %c0_i32_0 : i32, i32
  }
  func.func @transform_8(%arg0: i32, %arg1: i32) -> (i32, i32) {
    %c0_i32 = arith.constant 0 : i32
    %c0_i32_0 = arith.constant 0 : i32
    return %arg0, %c0_i32 : i32, i32
  }
}

</mosaic_0001>

<llo_original>
// kernel: lstm_regressor_forward.2
$region0: #{lstm_regressor_forward.2}
  #allocation0 [shape = 'u32[]', space=smem, size = 0x4, offset = 0x4, fixed_abs, tag = 'smem constant byte address 0x4 - core index']
  #allocation1 [shape = 'u32[72,128]{1,0:T(1,128)}', space=vmem, size = 0x9000, scoped, tag = 'internal scratch']
  #allocation2 [shape = 'f32[8,8,128]{2,1,0:T(8,128)}', space=vmem, size = 0x8000, scoped, tag = 'scratch operand']
  #allocation3 [shape = 'f32[8,32]{1,0:T(8,128)}', space=vmem, size = 0x1000, scoped, tag = 'scratch operand']
  #allocation4 [shape = 'f32[8,32]{1,0:T(8,128)}', space=vmem, size = 0x1000, scoped, tag = 'scratch operand']
  %s0 = inlined_call_operand.vmem [shape: f32[8,8,8], index: 0, kind: input, shape index: {}]
  %s1 = inlined_call_operand.vmem [shape: f32[8,128], index: 1, kind: input, shape index: {}]
  %s2 = inlined_call_operand.vmem [shape: f32[1,128], index: 2, kind: input, shape index: {}]
  %s3 = inlined_call_operand.vmem [shape: f32[32,128], index: 3, kind: input, shape index: {}]
  %s4 = inlined_call_operand.vmem [shape: bf16[8,8,32], index: 4, kind: output, shape index: {}]
  %s5 = sld [smem:[#allocation0]]
  $region30: #{lstm_regressor_forward.2} parent=0
    _
  %s7 = ssub.s32 1, %s5
  %s8 = scalar_select 0, %s7, %s5
  // Predicated region
  $region2: #{lstm_regressor_forward.2} parent=0 // pred_check
    _
  $region3: #{lstm_regressor_forward.2} parent=0 // pred_check_branch
    %10 = sbr.rel (0) target = $region5
  $region4: #{lstm_regressor_forward.2} parent=0 // pred_region
    _
  $region5: #{lstm_regressor_forward.2} parent=0 // pred_fallthru
    _
  // Predicated region
  $region6: #{lstm_regressor_forward.2} parent=0 // pred_check
    _
  $region7: #{lstm_regressor_forward.2} parent=0 // pred_check_branch
    %12 = sbr.rel (0) target = $region9
  $region8: #{lstm_regressor_forward.2} parent=0 // pred_region
    _
  $region9: #{lstm_regressor_forward.2} parent=0 // pred_fallthru
    _
  // Predicated region
  $region10: #{lstm_regressor_forward.2} parent=0 // pred_check
    _
  $region11: #{lstm_regressor_forward.2} parent=0 // pred_check_branch
    %14 = sbr.rel (0) target = $region13
  $region12: #{lstm_regressor_forward.2} parent=0 // pred_region
    _
  $region13: #{lstm_regressor_forward.2} parent=0 // pred_fallthru
    _
  // Predicated region
  $region14: #{lstm_regressor_forward.2} parent=0 // pred_check
    _
  $region15: #{lstm_regressor_forward.2} parent=0 // pred_check_branch
    %16 = sbr.rel (0) target = $region17
  $region16: #{lstm_regressor_forward.2} parent=0 // pred_region
    _
  $region17: #{lstm_regressor_forward.2} parent=0 // pred_fallthru
    _
  %p17 = scmp.eq.s32.totalorder 0, 0
  // Predicated region
  $region18: #{lstm_regressor_forward.2} parent=0 // pred_check
    %p18 = pneg %p17
  $region19: #{lstm_regressor_forward.2} parent=0 // pred_check_branch
    %20 = sbr.rel (%p18) target = $region21
  $region20: #{lstm_regressor_forward.2} parent=0 // pred_region
    %vm21 = vcmask 261120
    %22 = vst.msk [vmem:[#allocation3] sm:$0xff] %vm21, 0.0
    %23 = vst.msk [vmem:[#allocation4] sm:$0xff] %vm21, 0.0
  $region21: #{lstm_regressor_forward.2} parent=0 // pred_fallthru
    _
  %v24 = vld [vmem:[%s0] sm:$0xff]
  %v25 = vld [vmem:[%s0 + $0x8] sm:$0xff]
  %v26 = vld [vmem:[%s0 + $0x10] sm:$0xff]
  %v27 = vld [vmem:[%s0 + $0x18] sm:$0xff]
  %v28 = vld [vmem:[%s0 + $0x20] sm:$0xff]
  %v29 = vld [vmem:[%s0 + $0x28] sm:$0xff]
  %v30 = vld [vmem:[%s0 + $0x30] sm:$0xff]
  %v31 = vld [vmem:[%s0 + $0x38] sm:$0xff]
  %v32 = vld [vmem:[%s1] sm:$0xff]
  %v33 = vld [vmem:[%s2] sm:$0x1]
  %v35 = vperm.slane %v33, 0
  %vm37 = vcmask 64512
  %v39 = vsel %vm37, %v24, 0
  %v42 = vsel %vm37, %v25, 0
  %v45 = vsel %vm37, %v26, 0
  %v48 = vsel %vm37, %v27, 0
  %v51 = vsel %vm37, %v28, 0
  %v54 = vsel %vm37, %v29, 0
  %v57 = vsel %vm37, %v30, 0
  %v60 = vsel %vm37, %v31, 0
  %62 = vmatpush.msra.mxu0 0.0
  %63 = vmatpush.msra.mxu0 0.0
  %64 = vmatpush.msra.mxu0 0.0
  %65 = vmatpush.msra.mxu0 0.0
  %66 = vmatpush.msra.mxu0 0.0
  %67 = vmatpush.msra.mxu0 0.0
  %68 = vmatpush.msra.mxu0 0.0
  %69 = vmatpush.msra.mxu0 0.0
  %70 = vmatpush.msra.mxu0 0.0
  %71 = vmatpush.msra.mxu0 0.0
  %72 = vmatpush.msra.mxu0 0.0
  %73 = vmatpush.msra.mxu0 0.0
  %74 = vmatpush.msra.mxu0 0.0
  %75 = vmatpush.msra.mxu0 0.0
  %76 = vmatpush.msra.mxu0 0.0
  %77 = vmatpush.msra.mxu0 %v32
  %78 = vmatmul.f32.gmra.mxu0 %v39
  %v79 = vpop.f32.mrf.mxu0
  %v80 = vadd.f32 %v35, %v79
  %81 = vmatmul.f32.gmra.mxu0 %v42
  %v82 = vpop.f32.mrf.mxu0
  %v83 = vadd.f32 %v35, %v82
  %84 = vmatmul.f32.gmra.mxu0 %v45
  %v85 = vpop.f32.mrf.mxu0
  %v86 = vadd.f32 %v35, %v85
  %87 = vmatmul.f32.gmra.mxu0 %v48
  %v88 = vpop.f32.mrf.mxu0
  %v89 = vadd.f32 %v35, %v88
  %90 = vmatmul.f32.gmra.mxu0 %v51
  %v91 = vpop.f32.mrf.mxu0
  %v92 = vadd.f32 %v35, %v91
  %93 = vmatmul.f32.gmra.mxu0 %v54
  %v94 = vpop.f32.mrf.mxu0
  %v95 = vadd.f32 %v35, %v94
  %96 = vmatmul.f32.gmra.mxu0 %v57
  %v97 = vpop.f32.mrf.mxu0
  %v98 = vadd.f32 %v35, %v97
  %99 = vmatmul.f32.gmra.mxu0 %v60
  %v100 = vpop.f32.mrf.mxu0
  %v101 = vadd.f32 %v35, %v100
  %102 = vdwg.mxu0
  %103 = vst [vmem:[#allocation2] sm:$0xff] %v80
  %104 = vst [vmem:[#allocation2 + $0x8] sm:$0xff] %v83
  %105 = vst [vmem:[#allocation2 + $0x10] sm:$0xff] %v86
  %106 = vst [vmem:[#allocation2 + $0x18] sm:$0xff] %v89
  %107 = vst [vmem:[#allocation2 + $0x20] sm:$0xff] %v92
  %108 = vst [vmem:[#allocation2 + $0x28] sm:$0xff] %v95
  %109 = vst [vmem:[#allocation2 + $0x30] sm:$0xff] %v98
  %110 = vst [vmem:[#allocation2 + $0x38] sm:$0xff] %v101
  %v111 = vld [vmem:[%s3] sm:$0xff]
  %v112 = vld [vmem:[%s3 + $0x8] sm:$0xff]
  %v113 = vld [vmem:[%s3 + $0x10] sm:$0xff]
  %v114 = vld [vmem:[%s3 + $0x18] sm:$0xff]
  %v115 = vld [vmem:[#allocation3] sm:$0xff]
  %v116 = vld [vmem:[#allocation4] sm:$0xff]
  %v117 = vld [vmem:[#allocation2] sm:$0xff]
  %vm118 = vcmask 261120
  %v120 = vsel %vm118, %v115, 0
  %122 = vmatpush.msra.mxu0 0.0
  %123 = vmatpush.msra.mxu0 0.0
  %124 = vmatpush.msra.mxu0 0.0
  %125 = vmatpush.msra.mxu0 0.0
  %126 = vmatpush.msra.mxu0 0.0
  %127 = vmatpush.msra.mxu0 0.0
  %128 = vmatpush.msra.mxu0 0.0
  %129 = vmatpush.msra.mxu0 0.0
  %130 = vmatpush.msra.mxu0 0.0
  %131 = vmatpush.msra.mxu0 0.0
  %132 = vmatpush.msra.mxu0 0.0
  %133 = vmatpush.msra.mxu0 0.0
  %134 = vmatpush.msra.mxu0 %v114
  %135 = vmatpush.msra.mxu0 %v113
  %136 = vmatpush.msra.mxu0 %v112
  %137 = vmatpush.msra.mxu0 %v111
  %138 = vmatmul.f32.gmra.mxu0 %v120
  %v139 = vpop.f32.mrf.mxu0
  %v140 = vadd.f32 0.0, %v139
  %141 = vdwg.mxu0
  %v142 = vadd.f32 %v117, %v140
  %v143 = vxor.u32 %v142, 2147483648
  %v144 = vmul.f32 %v143, 1.442695
  %v145 = vpow.pop %v144
  %v146 = vadd.f32 %v145, 1.0
  %v147 = vrcp.pop %v146
  %v148 = vmul.f32 %v146, %v147
  %v149 = vsub.f32 1.0, %v148
  %v150 = vmul.f32 %v147, %v149
  %v151 = vadd.f32 %v147, %v150
  %vm152 = vweird.f32 %v146
  %vm153 = vweird.f32 %v147
  %vm154 = vmor %vm152, %vm153
  %v155 = vsel %vm154, %v147, %v151
  %v156 = vand.u32 2147483647, %v146
  %vm157 = vcmp.eq.f32.partialorder %v156, 8.507059e+37
  %v158 = vand.u32 %v146, 2147483648
  %v159 = vor.u32 1.1754944e-38, %v158
  %v160 = vsel %vm157, %v159, %v155
  %v161 = vmul.f32 1.0, %v160
  %v162 = vtanh.pop %v142
  %164 = vrot.lane.b32.xlu0 %v116, 32
  %v165 = vpop.permute.xlu0 %164
  %v167 = vmul.f32 %v161, %v165
  %169 = vrot.lane.b32.xlu0 %v162, 32
  %v170 = vpop.permute.xlu0 %169
  %v172 = vmul.f32 %v161, %v170
  %174 = vrot.lane.b32.xlu0 %v172, 32
  %v175 = vpop.permute.xlu0 %174
  %v177 = vadd.f32 %v167, %v175
  %v178 = vtanh.pop %v177
  %180 = vrot.lane.b32.xlu0 %v178, 32
  %v181 = vpop.permute.xlu0 %180
  %v183 = vmul.f32 %v161, %v181
  %v184 = vpack.c.bf16 %v183, %v183
  %186 = vrot.lane.b32.xlu0 %v184, 64
  %v187 = vpop.permute.xlu0 %186
  %vm189 = vcmask 257024
  %190 = vst.msk [vmem:[%s4] sm:$0xf] %vm189, %v187
  %s191 = scalar_lea.vmem [#allocation2], 8
  %v192 = vld [vmem:[%s191] sm:$0xff]
  %194 = vrot.lane.b32.xlu0 %v183, 64
  %v195 = vpop.permute.xlu0 %194
  %v196 = vsel %vm118, %v195, 0
  %198 = vmatpush.msra.mxu0 0.0
  %199 = vmatpush.msra.mxu0 0.0
  %200 = vmatpush.msra.mxu0 0.0
  %201 = vmatpush.msra.mxu0 0.0
  %202 = vmatpush.msra.mxu0 0.0
  %203 = vmatpush.msra.mxu0 0.0
  %204 = vmatpush.msra.mxu0 0.0
  %205 = vmatpush.msra.mxu0 0.0
  %206 = vmatpush.msra.mxu0 0.0
  %207 = vmatpush.msra.mxu0 0.0
  %208 = vmatpush.msra.mxu0 0.0
  %209 = vmatpush.msra.mxu0 0.0
  %210 = vmatpush.msra.mxu0 %v114
  %211 = vmatpush.msra.mxu0 %v113
  %212 = vmatpush.msra.mxu0 %v112
  %213 = vmatpush.msra.mxu0 %v111
  %214 = vmatmul.f32.gmra.mxu0 %v196
  %v215 = vpop.f32.mrf.mxu0
  %v216 = vadd.f32 0.0, %v215
  %217 = vdwg.mxu0
  %v218 = vadd.f32 %v192, %v216
  %v219 = vxor.u32 %v218, 2147483648
  %v220 = vmul.f32 %v219, 1.442695
  %v221 = vpow.pop %v220
  %v222 = vadd.f32 %v221, 1.0
  %v223 = vrcp.pop %v222
  %v224 = vmul.f32 %v222, %v223
  %v225 = vsub.f32 1.0, %v224
  %v226 = vmul.f32 %v223, %v225
  %v227 = vadd.f32 %v223, %v226
  %vm228 = vweird.f32 %v222
  %vm229 = vweird.f32 %v223
  %vm230 = vmor %vm228, %vm229
  %v231 = vsel %vm230, %v223, %v227
  %v232 = vand.u32 2147483647, %v222
  %vm233 = vcmp.eq.f32.partialorder %v232, 8.507059e+37
  %v234 = vand.u32 %v222, 2147483648
  %v235 = vor.u32 1.1754944e-38, %v234
  %v236 = vsel %vm233, %v235, %v231
  %v237 = vmul.f32 1.0, %v236
  %v238 = vtanh.pop %v218
  %v239 = vmul.f32 %v237, %v177
  %241 = vrot.lane.b32.xlu0 %v238, 32
  %v242 = vpop.permute.xlu0 %241
  %v244 = vmul.f32 %v237, %v242
  %246 = vrot.lane.b32.xlu0 %v244, 32
  %v247 = vpop.permute.xlu0 %246
  %v249 = vadd.f32 %v239, %v247
  %v250 = vtanh.pop %v249
  %252 = vrot.lane.b32.xlu0 %v250, 32
  %v253 = vpop.permute.xlu0 %252
  %v255 = vmul.f32 %v237, %v253
  %v256 = vpack.c.bf16 %v255, %v255
  %258 = vrot.lane.b32.xlu0 %v256, 64
  %v259 = vpop.permute.xlu0 %258
  %s261 = scalar_lea.vmem %s4, 4
  %262 = vst.msk [vmem:[%s261] sm:$0xf] %vm189, %v259
  %s263 = scalar_lea.vmem [#allocation2], 16
  %v264 = vld [vmem:[%s263] sm:$0xff]
  %266 = vrot.lane.b32.xlu0 %v255, 64
  %v267 = vpop.permute.xlu0 %266
  %v268 = vsel %vm118, %v267, 0
  %270 = vmatpush.msra.mxu0 0.0
  %271 = vmatpush.msra.mxu0 0.0
  %272 = vmatpush.msra.mxu0 0.0
  %273 = vmatpush.msra.mxu0 0.0
  %274 = vmatpush.msra.mxu0 0.0
  %275 = vmatpush.msra.mxu0 0.0
  %276 = vmatpush.msra.mxu0 0.0
  %277 = vmatpush.msra.mxu0 0.0
  %278 = vmatpush.msra.mxu0 0.0
  %279 = vmatpush.msra.mxu0 0.0
  %280 = vmatpush.msra.mxu0 0.0
  %281 = vmatpush.msra.mxu0 0.0
  %282 = vmatpush.msra.mxu0 %v114
  %283 = vmatpush.msra.mxu0 %v113
  %284 = vmatpush.msra.mxu0 %v112
  %285 = vmatpush.msra.mxu0 %v111
  %286 = vmatmul.f32.gmra.mxu0 %v268
  %v287 = vpop.f32.mrf.mxu0
  %v288 = vadd.f32 0.0, %v287
  %289 = vdwg.mxu0
  %v290 = vadd.f32 %v264, %v288
  %v291 = vxor.u32 %v290, 2147483648
  %v292 = vmul.f32 %v291, 1.442695
  %v293 = vpow.pop %v292
  %v294 = vadd.f32 %v293, 1.0
  %v295 = vrcp.pop %v294
  %v296 = vmul.f32 %v294, %v295
  %v297 = vsub.f32 1.0, %v296
  %v298 = vmul.f32 %v295, %v297
  %v299 = vadd.f32 %v295, %v298
  %vm300 = vweird.f32 %v294
  %vm301 = vweird.f32 %v295
  %vm302 = vmor %vm300, %vm301
  %v303 = vsel %vm302, %v295, %v299
  %v304 = vand.u32 2147483647, %v294
  %vm305 = vcmp.eq.f32.partialorder %v304, 8.507059e+37
  %v306 = vand.u32 %v294, 2147483648
  %v307 = vor.u32 1.1754944e-38, %v306
  %v308 = vsel %vm305, %v307, %v303
  %v309 = vmul.f32 1.0, %v308
  %v310 = vtanh.pop %v290
  %v311 = vmul.f32 %v309, %v249
  %313 = vrot.lane.b32.xlu0 %v310, 32
  %v314 = vpop.permute.xlu0 %313
  %v316 = vmul.f32 %v309, %v314
  %318 = vrot.lane.b32.xlu0 %v316, 32
  %v319 = vpop.permute.xlu0 %318
  %v321 = vadd.f32 %v311, %v319
  %v322 = vtanh.pop %v321
  %324 = vrot.lane.b32.xlu0 %v322, 32
  %v325 = vpop.permute.xlu0 %324
  %v327 = vmul.f32 %v309, %v325
  %v328 = vpack.c.bf16 %v327, %v327
  %330 = vrot.lane.b32.xlu0 %v328, 64
  %v331 = vpop.permute.xlu0 %330
  %s333 = scalar_lea.vmem %s4, 8
  %334 = vst.msk [vmem:[%s333] sm:$0xf] %vm189, %v331
  %s335 = scalar_lea.vmem [#allocation2], 24
  %v336 = vld [vmem:[%s335] sm:$0xff]
  %338 = vrot.lane.b32.xlu0 %v327, 64
  %v339 = vpop.permute.xlu0 %338
  %v340 = vsel %vm118, %v339, 0
  %342 = vmatpush.msra.mxu0 0.0
  %343 = vmatpush.msra.mxu0 0.0
  %344 = vmatpush.msra.mxu0 0.0
  %345 = vmatpush.msra.mxu0 0.0
  %346 = vmatpush.msra.mxu0 0.0
  %347 = vmatpush.msra.mxu0 0.0
  %348 = vmatpush.msra.mxu0 0.0
  %349 = vmatpush.msra.mxu0 0.0
  %350 = vmatpush.msra.mxu0 0.0
  %351 = vmatpush.msra.mxu0 0.0
  %352 = vmatpush.msra.mxu0 0.0
  %353 = vmatpush.msra.mxu0 0.0
  %354 = vmatpush.msra.mxu0 %v114
  %355 = vmatpush.msra.mxu0 %v113
  %356 = vmatpush.msra.mxu0 %v112
  %357 = vmatpush.msra.mxu0 %v111
  %358 = vmatmul.f32.gmra.mxu0 %v340
  %v359 = vpop.f32.mrf.mxu0
  %v360 = vadd.f32 0.0, %v359
  %361 = vdwg.mxu0
  %v362 = vadd.f32 %v336, %v360
  %v363 = vxor.u32 %v362, 2147483648
  %v364 = vmul.f32 %v363, 1.442695
  %v365 = vpow.pop %v364
  %v366 = vadd.f32 %v365, 1.0
  %v367 = vrcp.pop %v366
  %v368 = vmul.f32 %v366, %v367
  %v369 = vsub.f32 1.0, %v368
  %v370 = vmul.f32 %v367, %v369
  %v371 = vadd.f32 %v367, %v370
  %vm372 = vweird.f32 %v366
  %vm373 = vweird.f32 %v367
  %vm374 = vmor %vm372, %vm373
  %v375 = vsel %vm374, %v367, %v371
  %v376 = vand.u32 2147483647, %v366
  %vm377 = vcmp.eq.f32.partialorder %v376, 8.507059e+37
  %v378 = vand.u32 %v366, 2147483648
  %v379 = vor.u32 1.1754944e-38, %v378
  %v380 = vsel %vm377, %v379, %v375
  %v381 = vmul.f32 1.0, %v380
  %v382 = vtanh.pop %v362
  %v383 = vmul.f32 %v381, %v321
  %385 = vrot.lane.b32.xlu0 %v382, 32
  %v386 = vpop.permute.xlu0 %385
  %v388 = vmul.f32 %v381, %v386
  %390 = vrot.lane.b32.xlu0 %v388, 32
  %v391 = vpop.permute.xlu0 %390
  %v393 = vadd.f32 %v383, %v391
  %v394 = vtanh.pop %v393
  %396 = vrot.lane.b32.xlu0 %v394, 32
  %v397 = vpop.permute.xlu0 %396
  %v399 = vmul.f32 %v381, %v397
  %v400 = vpack.c.bf16 %v399, %v399
  %402 = vrot.lane.b32.xlu0 %v400, 64
  %v403 = vpop.permute.xlu0 %402
  %s405 = scalar_lea.vmem %s4, 12
  %406 = vst.msk [vmem:[%s405] sm:$0xf] %vm189, %v403
  %s407 = scalar_lea.vmem [#allocation2], 32
  %v408 = vld [vmem:[%s407] sm:$0xff]
  %410 = vrot.lane.b32.xlu0 %v399, 64
  %v411 = vpop.permute.xlu0 %410
  %v412 = vsel %vm118, %v411, 0
  %414 = vmatpush.msra.mxu0 0.0
  %415 = vmatpush.msra.mxu0 0.0
  %416 = vmatpush.msra.mxu0 0.0
  %417 = vmatpush.msra.mxu0 0.0
  %418 = vmatpush.msra.mxu0 0.0
  %419 = vmatpush.msra.mxu0 0.0
  %420 = vmatpush.msra.mxu0 0.0
  %421 = vmatpush.msra.mxu0 0.0
  %422 = vmatpush.msra.mxu0 0.0
  %423 = vmatpush.msra.mxu0 0.0
  %424 = vmatpush.msra.mxu0 0.0
  %425 = vmatpush.msra.mxu0 0.0
  %426 = vmatpush.msra.mxu0 %v114
  %427 = vmatpush.msra.mxu0 %v113
  %428 = vmatpush.msra.mxu0 %v112
  %429 = vmatpush.msra.mxu0 %v111
  %430 = vmatmul.f32.gmra.mxu0 %v412
  %v431 = vpop.f32.mrf.mxu0
  %v432 = vadd.f32 0.0, %v431
  %433 = vdwg.mxu0
  %v434 = vadd.f32 %v408, %v432
  %v435 = vxor.u32 %v434, 2147483648
  %v436 = vmul.f32 %v435, 1.442695
  %v437 = vpow.pop %v436
  %v438 = vadd.f32 %v437, 1.0
  %v439 = vrcp.pop %v438
  %v440 = vmul.f32 %v438, %v439
  %v441 = vsub.f32 1.0, %v440
  %v442 = vmul.f32 %v439, %v441
  %v443 = vadd.f32 %v439, %v442
  %vm444 = vweird.f32 %v438
  %vm445 = vweird.f32 %v439
  %vm446 = vmor %vm444, %vm445
  %v447 = vsel %vm446, %v439, %v443
  %v448 = vand.u32 2147483647, %v438
  %vm449 = vcmp.eq.f32.partialorder %v448, 8.507059e+37
  %v450 = vand.u32 %v438, 2147483648
  %v451 = vor.u32 1.1754944e-38, %v450
  %v452 = vsel %vm449, %v451, %v447
  %v453 = vmul.f32 1.0, %v452
  %v454 = vtanh.pop %v434
  %v455 = vmul.f32 %v453, %v393
  %457 = vrot.lane.b32.xlu0 %v454, 32
  %v458 = vpop.permute.xlu0 %457
  %v460 = vmul.f32 %v453, %v458
  %462 = vrot.lane.b32.xlu0 %v460, 32
  %v463 = vpop.permute.xlu0 %462
  %v465 = vadd.f32 %v455, %v463
  %v466 = vtanh.pop %v465
  %468 = vrot.lane.b32.xlu0 %v466, 32
  %v469 = vpop.permute.xlu0 %468
  %v471 = vmul.f32 %v453, %v469
  %v472 = vpack.c.bf16 %v471, %v471
  %474 = vrot.lane.b32.xlu0 %v472, 64
  %v475 = vpop.permute.xlu0 %474
  %s477 = scalar_lea.vmem %s4, 16
  %478 = vst.msk [vmem:[%s477] sm:$0xf] %vm189, %v475
  %s479 = scalar_lea.vmem [#allocation2], 40
  %v480 = vld [vmem:[%s479] sm:$0xff]
  %482 = vrot.lane.b32.xlu0 %v471, 64
  %v483 = vpop.permute.xlu0 %482
  %v484 = vsel %vm118, %v483, 0
  %486 = vmatpush.msra.mxu0 0.0
  %487 = vmatpush.msra.mxu0 0.0
  %488 = vmatpush.msra.mxu0 0.0
  %489 = vmatpush.msra.mxu0 0.0
  %490 = vmatpush.msra.mxu0 0.0
  %491 = vmatpush.msra.mxu0 0.0
  %492 = vmatpush.msra.mxu0 0.0
  %493 = vmatpush.msra.mxu0 0.0
  %494 = vmatpush.msra.mxu0 0.0
  %495 = vmatpush.msra.mxu0 0.0
  %496 = vmatpush.msra.mxu0 0.0
  %497 = vmatpush.msra.mxu0 0.0
  %498 = vmatpush.msra.mxu0 %v114
  %499 = vmatpush.msra.mxu0 %v113
  %500 = vmatpush.msra.mxu0 %v112
  %501 = vmatpush.msra.mxu0 %v111
  %502 = vmatmul.f32.gmra.mxu0 %v484
  %v503 = vpop.f32.mrf.mxu0
  %v504 = vadd.f32 0.0, %v503
  %505 = vdwg.mxu0
  %v506 = vadd.f32 %v480, %v504
  %v507 = vxor.u32 %v506, 2147483648
  %v508 = vmul.f32 %v507, 1.442695
  %v509 = vpow.pop %v508
  %v510 = vadd.f32 %v509, 1.0
  %v511 = vrcp.pop %v510
  %v512 = vmul.f32 %v510, %v511
  %v513 = vsub.f32 1.0, %v512
  %v514 = vmul.f32 %v511, %v513
  %v515 = vadd.f32 %v511, %v514
  %vm516 = vweird.f32 %v510
  %vm517 = vweird.f32 %v511
  %vm518 = vmor %vm516, %vm517
  %v519 = vsel %vm518, %v511, %v515
  %v520 = vand.u32 2147483647, %v510
  %vm521 = vcmp.eq.f32.partialorder %v520, 8.507059e+37
  %v522 = vand.u32 %v510, 2147483648
  %v523 = vor.u32 1.1754944e-38, %v522
  %v524 = vsel %vm521, %v523, %v519
  %v525 = vmul.f32 1.0, %v524
  %v526 = vtanh.pop %v506
  %v527 = vmul.f32 %v525, %v465
  %529 = vrot.lane.b32.xlu0 %v526, 32
  %v530 = vpop.permute.xlu0 %529
  %v532 = vmul.f32 %v525, %v530
  %534 = vrot.lane.b32.xlu0 %v532, 32
  %v535 = vpop.permute.xlu0 %534
  %v537 = vadd.f32 %v527, %v535
  %v538 = vtanh.pop %v537
  %540 = vrot.lane.b32.xlu0 %v538, 32
  %v541 = vpop.permute.xlu0 %540
  %v543 = vmul.f32 %v525, %v541
  %v544 = vpack.c.bf16 %v543, %v543
  %546 = vrot.lane.b32.xlu0 %v544, 64
  %v547 = vpop.permute.xlu0 %546
  %s549 = scalar_lea.vmem %s4, 20
  %550 = vst.msk [vmem:[%s549] sm:$0xf] %vm189, %v547
  %s551 = scalar_lea.vmem [#allocation2], 48
  %v552 = vld [vmem:[%s551] sm:$0xff]
  %554 = vrot.lane.b32.xlu0 %v543, 64
  %v555 = vpop.permute.xlu0 %554
  %v556 = vsel %vm118, %v555, 0
  %558 = vmatpush.msra.mxu0 0.0
  %559 = vmatpush.msra.mxu0 0.0
  %560 = vmatpush.msra.mxu0 0.0
  %561 = vmatpush.msra.mxu0 0.0
  %562 = vmatpush.msra.mxu0 0.0
  %563 = vmatpush.msra.mxu0 0.0
  %564 = vmatpush.msra.mxu0 0.0
  %565 = vmatpush.msra.mxu0 0.0
  %566 = vmatpush.msra.mxu0 0.0
  %567 = vmatpush.msra.mxu0 0.0
  %568 = vmatpush.msra.mxu0 0.0
  %569 = vmatpush.msra.mxu0 0.0
  %570 = vmatpush.msra.mxu0 %v114
  %571 = vmatpush.msra.mxu0 %v113
  %572 = vmatpush.msra.mxu0 %v112
  %573 = vmatpush.msra.mxu0 %v111
  %574 = vmatmul.f32.gmra.mxu0 %v556
  %v575 = vpop.f32.mrf.mxu0
  %v576 = vadd.f32 0.0, %v575
  %577 = vdwg.mxu0
  %v578 = vadd.f32 %v552, %v576
  %v579 = vxor.u32 %v578, 2147483648
  %v580 = vmul.f32 %v579, 1.442695
  %v581 = vpow.pop %v580
  %v582 = vadd.f32 %v581, 1.0
  %v583 = vrcp.pop %v582
  %v584 = vmul.f32 %v582, %v583
  %v585 = vsub.f32 1.0, %v584
  %v586 = vmul.f32 %v583, %v585
  %v587 = vadd.f32 %v583, %v586
  %vm588 = vweird.f32 %v582
  %vm589 = vweird.f32 %v583
  %vm590 = vmor %vm588, %vm589
  %v591 = vsel %vm590, %v583, %v587
  %v592 = vand.u32 2147483647, %v582
  %vm593 = vcmp.eq.f32.partialorder %v592, 8.507059e+37
  %v594 = vand.u32 %v582, 2147483648
  %v595 = vor.u32 1.1754944e-38, %v594
  %v596 = vsel %vm593, %v595, %v591
  %v597 = vmul.f32 1.0, %v596
  %v598 = vtanh.pop %v578
  %v599 = vmul.f32 %v597, %v537
  %601 = vrot.lane.b32.xlu0 %v598, 32
  %v602 = vpop.permute.xlu0 %601
  %v604 = vmul.f32 %v597, %v602
  %606 = vrot.lane.b32.xlu0 %v604, 32
  %v607 = vpop.permute.xlu0 %606
  %v609 = vadd.f32 %v599, %v607
  %v610 = vtanh.pop %v609
  %612 = vrot.lane.b32.xlu0 %v610, 32
  %v613 = vpop.permute.xlu0 %612
  %v615 = vmul.f32 %v597, %v613
  %v616 = vpack.c.bf16 %v615, %v615
  %618 = vrot.lane.b32.xlu0 %v616, 64
  %v619 = vpop.permute.xlu0 %618
  %s621 = scalar_lea.vmem %s4, 24
  %622 = vst.msk [vmem:[%s621] sm:$0xf] %vm189, %v619
  %s623 = scalar_lea.vmem [#allocation2], 56
  %v624 = vld [vmem:[%s623] sm:$0xff]
  %626 = vrot.lane.b32.xlu0 %v615, 64
  %v627 = vpop.permute.xlu0 %626
  %v628 = vsel %vm118, %v627, 0
  %630 = vmatpush.msra.mxu0 0.0
  %631 = vmatpush.msra.mxu0 0.0
  %632 = vmatpush.msra.mxu0 0.0
  %633 = vmatpush.msra.mxu0 0.0
  %634 = vmatpush.msra.mxu0 0.0
  %635 = vmatpush.msra.mxu0 0.0
  %636 = vmatpush.msra.mxu0 0.0
  %637 = vmatpush.msra.mxu0 0.0
  %638 = vmatpush.msra.mxu0 0.0
  %639 = vmatpush.msra.mxu0 0.0
  %640 = vmatpush.msra.mxu0 0.0
  %641 = vmatpush.msra.mxu0 0.0
  %642 = vmatpush.msra.mxu0 %v114
  %643 = vmatpush.msra.mxu0 %v113
  %644 = vmatpush.msra.mxu0 %v112
  %645 = vmatpush.msra.mxu0 %v111
  %646 = vmatmul.f32.gmra.mxu0 %v628
  %v647 = vpop.f32.mrf.mxu0
  %v648 = vadd.f32 0.0, %v647
  %649 = vdwg.mxu0
  %v650 = vadd.f32 %v624, %v648
  %v651 = vxor.u32 %v650, 2147483648
  %v652 = vmul.f32 %v651, 1.442695
  %v653 = vpow.pop %v652
  %v654 = vadd.f32 %v653, 1.0
  %v655 = vrcp.pop %v654
  %v656 = vmul.f32 %v654, %v655
  %v657 = vsub.f32 1.0, %v656
  %v658 = vmul.f32 %v655, %v657
  %v659 = vadd.f32 %v655, %v658
  %vm660 = vweird.f32 %v654
  %vm661 = vweird.f32 %v655
  %vm662 = vmor %vm660, %vm661
  %v663 = vsel %vm662, %v655, %v659
  %v664 = vand.u32 2147483647, %v654
  %vm665 = vcmp.eq.f32.partialorder %v664, 8.507059e+37
  %v666 = vand.u32 %v654, 2147483648
  %v667 = vor.u32 1.1754944e-38, %v666
  %v668 = vsel %vm665, %v667, %v663
  %v669 = vmul.f32 1.0, %v668
  %v670 = vtanh.pop %v650
  %v671 = vmul.f32 %v669, %v609
  %673 = vrot.lane.b32.xlu0 %v670, 32
  %v674 = vpop.permute.xlu0 %673
  %v676 = vmul.f32 %v669, %v674
  %678 = vrot.lane.b32.xlu0 %v676, 32
  %v679 = vpop.permute.xlu0 %678
  %v681 = vadd.f32 %v671, %v679
  %v682 = vtanh.pop %v681
  %684 = vrot.lane.b32.xlu0 %v682, 32
  %v685 = vpop.permute.xlu0 %684
  %v687 = vmul.f32 %v669, %v685
  %v688 = vpack.c.bf16 %v687, %v687
  %690 = vrot.lane.b32.xlu0 %v688, 64
  %v691 = vpop.permute.xlu0 %690
  %s693 = scalar_lea.vmem %s4, 28
  %694 = vst.msk [vmem:[%s693] sm:$0xf] %vm189, %v691
  %696 = vrot.lane.b32.xlu0 %v687, 64
  %v697 = vpop.permute.xlu0 %696
  %699 = vst.msk [vmem:[#allocation3] sm:$0xff] %vm118, %v697
  %701 = vrot.lane.b32.xlu0 %v681, 96
  %v702 = vpop.permute.xlu0 %701
  %704 = vst.msk [vmem:[#allocation4] sm:$0xff] %vm118, %v702
  // Predicated region
  $region22: #{lstm_regressor_forward.2} parent=0 // pred_check
    _
  $region23: #{lstm_regressor_forward.2} parent=0 // pred_check_branch
    %706 = sbr.rel (0) target = $region25
  $region24: #{lstm_regressor_forward.2} parent=0 // pred_region
    _
  $region25: #{lstm_regressor_forward.2} parent=0 // pred_fallthru
    _
  // Predicated region
  $region26: #{lstm_regressor_forward.2} parent=0 // pred_check
    _
  $region27: #{lstm_regressor_forward.2} parent=0 // pred_check_branch
    %708 = sbr.rel (0) target = $region29
  $region28: #{lstm_regressor_forward.2} parent=0 // pred_region
    _
  $region29: #{lstm_regressor_forward.2} parent=0 // pred_fallthru
    _

// kernel: lstm_regressor_forward.3
$region0: #{lstm_regressor_forward.3}
  #allocation0 [shape = 'u32[]', space=smem, size = 0x4, offset = 0x4, fixed_abs, tag = 'smem constant byte address 0x4 - core index']
  #allocation1 [shape = 'u32[72,128]{1,0:T(1,128)}', space=vmem, size = 0x9000, scoped, tag = 'internal scratch']
  #allocation2 [shape = 'f32[8,8,128]{2,1,0:T(8,128)}', space=vmem, size = 0x8000, scoped, tag = 'scratch operand']
  #allocation3 [shape = 'f32[8,32]{1,0:T(8,128)}', space=vmem, size = 0x1000, scoped, tag = 'scratch operand']
  #allocation4 [shape = 'f32[8,32]{1,0:T(8,128)}', space=vmem, size = 0x1000, scoped, tag = 'scratch operand']
  #allocation5 [shape = 'f32[1,1]{1,0:T(1,128)S(1)}', space=vmem, size = 0x200, scoped, tag = 'scoped memory for lstm_regressor_forward.3']
  %s0 = inlined_call_operand.vmem [shape: bf16[8,8,32], index: 0, kind: input, shape index: {}]
  %s1 = inlined_call_operand.vmem [shape: f32[32,128], index: 1, kind: input, shape index: {}]
  %s2 = inlined_call_operand.vmem [shape: f32[1,128], index: 2, kind: input, shape index: {}]
  %s3 = inlined_call_operand.vmem [shape: f32[32,128], index: 3, kind: input, shape index: {}]
  %s4 = inlined_call_operand.vmem [shape: f32[32,16], index: 4, kind: input, shape index: {}]
  %s5 = inlined_call_operand.vmem [shape: f32[1,16], index: 5, kind: input, shape index: {}]
  %s6 = inlined_call_operand.vmem [shape: f32[1,16], index: 6, kind: input, shape index: {}]
  %s7 = inlined_call_operand.<no memory space> [shape: f32[1,1], index: 7, kind: input, shape index: {}]
  %s8 = inlined_call_operand.vmem [shape: f32[8,1], index: 8, kind: output, shape index: {}]
  %s9 = sld [smem:[#allocation0]]
  $region50: #{lstm_regressor_forward.3} parent=0
    _
  %s11 = ssub.s32 1, %s9
  %s12 = scalar_select 0, %s11, %s9
  %v13 = vstv %s7
  %14 = vst [vmem:[#allocation5] sm:$0x1] %v13
  // Predicated region
  $region2: #{lstm_regressor_forward.3} parent=0 // pred_check
    _
  $region3: #{lstm_regressor_forward.3} parent=0 // pred_check_branch
    %16 = sbr.rel (0) target = $region5
  $region4: #{lstm_regressor_forward.3} parent=0 // pred_region
    _
  $region5: #{lstm_regressor_forward.3} parent=0 // pred_fallthru
    _
  // Predicated region
  $region6: #{lstm_regressor_forward.3} parent=0 // pred_check
    _
  $region7: #{lstm_regressor_forward.3} parent=0 // pred_check_branch
    %18 = sbr.rel (0) target = $region9
  $region8: #{lstm_regressor_forward.3} parent=0 // pred_region
    _
  $region9: #{lstm_regressor_forward.3} parent=0 // pred_fallthru
    _
  // Predicated region
  $region10: #{lstm_regressor_forward.3} parent=0 // pred_check
    _
  $region11: #{lstm_regressor_forward.3} parent=0 // pred_check_branch
    %20 = sbr.rel (0) target = $region13
  $region12: #{lstm_regressor_forward.3} parent=0 // pred_region
    _
  $region13: #{lstm_regressor_forward.3} parent=0 // pred_fallthru
    _
  // Predicated region
  $region14: #{lstm_regressor_forward.3} parent=0 // pred_check
    _
  $region15: #{lstm_regressor_forward.3} parent=0 // pred_check_branch
    %22 = sbr.rel (0) target = $region17
  $region16: #{lstm_regressor_forward.3} parent=0 // pred_region
    _
  $region17: #{lstm_regressor_forward.3} parent=0 // pred_fallthru
    _
  // Predicated region
  $region18: #{lstm_regressor_forward.3} parent=0 // pred_check
    _
  $region19: #{lstm_regressor_forward.3} parent=0 // pred_check_branch
    %24 = sbr.rel (0) target = $region21
  $region20: #{lstm_regressor_forward.3} parent=0 // pred_region
    _
  $region21: #{lstm_regressor_forward.3} parent=0 // pred_fallthru
    _
  // Predicated region
  $region22: #{lstm_regressor_forward.3} parent=0 // pred_check
    _
  $region23: #{lstm_regressor_forward.3} parent=0 // pred_check_branch
    %26 = sbr.rel (0) target = $region25
  $region24: #{lstm_regressor_forward.3} parent=0 // pred_region
    _
  $region25: #{lstm_regressor_forward.3} parent=0 // pred_fallthru
    _
  // Predicated region
  $region26: #{lstm_regressor_forward.3} parent=0 // pred_check
    _
  $region27: #{lstm_regressor_forward.3} parent=0 // pred_check_branch
    %28 = sbr.rel (0) target = $region29
  $region28: #{lstm_regressor_forward.3} parent=0 // pred_region
    _
  $region29: #{lstm_regressor_forward.3} parent=0 // pred_fallthru
    _
  // Predicated region
  $region30: #{lstm_regressor_forward.3} parent=0 // pred_check
    _
  $region31: #{lstm_regressor_forward.3} parent=0 // pred_check_branch
    %30 = sbr.rel (0) target = $region33
  $region32: #{lstm_regressor_forward.3} parent=0 // pred_region
    _
  $region33: #{lstm_regressor_forward.3} parent=0 // pred_fallthru
    _
  %p31 = scmp.eq.s32.totalorder 0, 0
  // Predicated region
  $region34: #{lstm_regressor_forward.3} parent=0 // pred_check
    %p32 = pneg %p31
  $region35: #{lstm_regressor_forward.3} parent=0 // pred_check_branch
    %34 = sbr.rel (%p32) target = $region37
  $region36: #{lstm_regressor_forward.3} parent=0 // pred_region
    %vm35 = vcmask 261120
    %36 = vst.msk [vmem:[#allocation3] sm:$0xff] %vm35, 0.0
    %37 = vst.msk [vmem:[#allocation4] sm:$0xff] %vm35, 0.0
  $region37: #{lstm_regressor_forward.3} parent=0 // pred_fallthru
    _
  %v38 = vld [vmem:[%s0] sm:$0xf]
  %v39 = vld [vmem:[%s0 + $0x4] sm:$0xf]
  %v40 = vld [vmem:[%s0 + $0x8] sm:$0xf]
  %v41 = vld [vmem:[%s0 + $0xc] sm:$0xf]
  %v42 = vld [vmem:[%s0 + $0x10] sm:$0xf]
  %v43 = vld [vmem:[%s0 + $0x14] sm:$0xf]
  %v44 = vld [vmem:[%s0 + $0x18] sm:$0xf]
  %v45 = vld [vmem:[%s0 + $0x1c] sm:$0xf]
  %v46 = vunpack.c.l.bf16 %v38
  %v47 = vunpack.c.l.bf16 %v39
  %v48 = vunpack.c.l.bf16 %v40
  %v49 = vunpack.c.l.bf16 %v41
  %v50 = vunpack.c.l.bf16 %v42
  %v51 = vunpack.c.l.bf16 %v43
  %v52 = vunpack.c.l.bf16 %v44
  %v53 = vunpack.c.l.bf16 %v45
  %v54 = vld [vmem:[%s1] sm:$0xff]
  %v55 = vld [vmem:[%s1 + $0x8] sm:$0xff]
  %v56 = vld [vmem:[%s1 + $0x10] sm:$0xff]
  %v57 = vld [vmem:[%s1 + $0x18] sm:$0xff]
  %v58 = vld [vmem:[%s2] sm:$0x1]
  %v60 = vperm.slane %v58, 0
  %vm62 = vcmask 261120
  %v64 = vsel %vm62, %v46, 0
  %v67 = vsel %vm62, %v47, 0
  %v70 = vsel %vm62, %v48, 0
  %v73 = vsel %vm62, %v49, 0
  %v76 = vsel %vm62, %v50, 0
  %v79 = vsel %vm62, %v51, 0
  %v82 = vsel %vm62, %v52, 0
  %v85 = vsel %vm62, %v53, 0
  %87 = vmatpush.msra.mxu0 0.0
  %88 = vmatpush.msra.mxu0 0.0
  %89 = vmatpush.msra.mxu0 0.0
  %90 = vmatpush.msra.mxu0 0.0
  %91 = vmatpush.msra.mxu0 0.0
  %92 = vmatpush.msra.mxu0 0.0
  %93 = vmatpush.msra.mxu0 0.0
  %94 = vmatpush.msra.mxu0 0.0
  %95 = vmatpush.msra.mxu0 0.0
  %96 = vmatpush.msra.mxu0 0.0
  %97 = vmatpush.msra.mxu0 0.0
  %98 = vmatpush.msra.mxu0 0.0
  %99 = vmatpush.msra.mxu0 %v57
  %100 = vmatpush.msra.mxu0 %v56
  %101 = vmatpush.msra.mxu0 %v55
  %102 = vmatpush.msra.mxu0 %v54
  %103 = vmatmul.f32.gmra.mxu0 %v64
  %v104 = vpop.f32.mrf.mxu0
  %v105 = vadd.f32 %v60, %v104
  %106 = vmatmul.f32.gmra.mxu0 %v67
  %v107 = vpop.f32.mrf.mxu0
  %v108 = vadd.f32 %v60, %v107
  %109 = vmatmul.f32.gmra.mxu0 %v70
  %v110 = vpop.f32.mrf.mxu0
  %v111 = vadd.f32 %v60, %v110
  %112 = vmatmul.f32.gmra.mxu0 %v73
  %v113 = vpop.f32.mrf.mxu0
  %v114 = vadd.f32 %v60, %v113
  %115 = vmatmul.f32.gmra.mxu0 %v76
  %v116 = vpop.f32.mrf.mxu0
  %v117 = vadd.f32 %v60, %v116
  %118 = vmatmul.f32.gmra.mxu0 %v79
  %v119 = vpop.f32.mrf.mxu0
  %v120 = vadd.f32 %v60, %v119
  %121 = vmatmul.f32.gmra.mxu0 %v82
  %v122 = vpop.f32.mrf.mxu0
  %v123 = vadd.f32 %v60, %v122
  %124 = vmatmul.f32.gmra.mxu0 %v85
  %v125 = vpop.f32.mrf.mxu0
  %v126 = vadd.f32 %v60, %v125
  %127 = vdwg.mxu0
  %128 = vst [vmem:[#allocation2] sm:$0xff] %v105
  %129 = vst [vmem:[#allocation2 + $0x8] sm:$0xff] %v108
  %130 = vst [vmem:[#allocation2 + $0x10] sm:$0xff] %v111
  %131 = vst [vmem:[#allocation2 + $0x18] sm:$0xff] %v114
  %132 = vst [vmem:[#allocation2 + $0x20] sm:$0xff] %v117
  %133 = vst [vmem:[#allocation2 + $0x28] sm:$0xff] %v120
  %134 = vst [vmem:[#allocation2 + $0x30] sm:$0xff] %v123
  %135 = vst [vmem:[#allocation2 + $0x38] sm:$0xff] %v126
  %v136 = vld [vmem:[%s3] sm:$0xff]
  %v137 = vld [vmem:[%s3 + $0x8] sm:$0xff]
  %v138 = vld [vmem:[%s3 + $0x10] sm:$0xff]
  %v139 = vld [vmem:[%s3 + $0x18] sm:$0xff]
  %v140 = vld [vmem:[#allocation3] sm:$0xff]
  %v141 = vld [vmem:[#allocation4] sm:$0xff]
  %v142 = vld [vmem:[#allocation2] sm:$0xff]
  %v144 = vsel %vm62, %v140, 0
  %146 = vmatpush.msra.mxu0 0.0
  %147 = vmatpush.msra.mxu0 0.0
  %148 = vmatpush.msra.mxu0 0.0
  %149 = vmatpush.msra.mxu0 0.0
  %150 = vmatpush.msra.mxu0 0.0
  %151 = vmatpush.msra.mxu0 0.0
  %152 = vmatpush.msra.mxu0 0.0
  %153 = vmatpush.msra.mxu0 0.0
  %154 = vmatpush.msra.mxu0 0.0
  %155 = vmatpush.msra.mxu0 0.0
  %156 = vmatpush.msra.mxu0 0.0
  %157 = vmatpush.msra.mxu0 0.0
  %158 = vmatpush.msra.mxu0 %v139
  %159 = vmatpush.msra.mxu0 %v138
  %160 = vmatpush.msra.mxu0 %v137
  %161 = vmatpush.msra.mxu0 %v136
  %162 = vmatmul.f32.gmra.mxu0 %v144
  %v163 = vpop.f32.mrf.mxu0
  %v164 = vadd.f32 0.0, %v163
  %165 = vdwg.mxu0
  %v166 = vadd.f32 %v142, %v164
  %v167 = vxor.u32 %v166, 2147483648
  %v168 = vmul.f32 %v167, 1.442695
  %v169 = vpow.pop %v168
  %v170 = vadd.f32 %v169, 1.0
  %v171 = vrcp.pop %v170
  %v172 = vmul.f32 %v170, %v171
  %v173 = vsub.f32 1.0, %v172
  %v174 = vmul.f32 %v171, %v173
  %v175 = vadd.f32 %v171, %v174
  %vm176 = vweird.f32 %v170
  %vm177 = vweird.f32 %v171
  %vm178 = vmor %vm176, %vm177
  %v179 = vsel %vm178, %v171, %v175
  %v180 = vand.u32 2147483647, %v170
  %vm181 = vcmp.eq.f32.partialorder %v180, 8.507059e+37
  %v182 = vand.u32 %v170, 2147483648
  %v183 = vor.u32 1.1754944e-38, %v182
  %v184 = vsel %vm181, %v183, %v179
  %v185 = vmul.f32 1.0, %v184
  %v186 = vtanh.pop %v166
  %188 = vrot.lane.b32.xlu0 %v141, 32
  %v189 = vpop.permute.xlu0 %188
  %v191 = vmul.f32 %v185, %v189
  %193 = vrot.lane.b32.xlu0 %v186, 32
  %v194 = vpop.permute.xlu0 %193
  %v196 = vmul.f32 %v185, %v194
  %198 = vrot.lane.b32.xlu0 %v196, 32
  %v199 = vpop.permute.xlu0 %198
  %v201 = vadd.f32 %v191, %v199
  %v202 = vtanh.pop %v201
  %204 = vrot.lane.b32.xlu0 %v202, 32
  %v205 = vpop.permute.xlu0 %204
  %v207 = vmul.f32 %v185, %v205
  %s208 = scalar_lea.vmem [#allocation2], 8
  %v209 = vld [vmem:[%s208] sm:$0xff]
  %211 = vrot.lane.b32.xlu0 %v207, 64
  %v212 = vpop.permute.xlu0 %211
  %v213 = vsel %vm62, %v212, 0
  %215 = vmatpush.msra.mxu0 0.0
  %216 = vmatpush.msra.mxu0 0.0
  %217 = vmatpush.msra.mxu0 0.0
  %218 = vmatpush.msra.mxu0 0.0
  %219 = vmatpush.msra.mxu0 0.0
  %220 = vmatpush.msra.mxu0 0.0
  %221 = vmatpush.msra.mxu0 0.0
  %222 = vmatpush.msra.mxu0 0.0
  %223 = vmatpush.msra.mxu0 0.0
  %224 = vmatpush.msra.mxu0 0.0
  %225 = vmatpush.msra.mxu0 0.0
  %226 = vmatpush.msra.mxu0 0.0
  %227 = vmatpush.msra.mxu0 %v139
  %228 = vmatpush.msra.mxu0 %v138
  %229 = vmatpush.msra.mxu0 %v137
  %230 = vmatpush.msra.mxu0 %v136
  %231 = vmatmul.f32.gmra.mxu0 %v213
  %v232 = vpop.f32.mrf.mxu0
  %v233 = vadd.f32 0.0, %v232
  %234 = vdwg.mxu0
  %v235 = vadd.f32 %v209, %v233
  %v236 = vxor.u32 %v235, 2147483648
  %v237 = vmul.f32 %v236, 1.442695
  %v238 = vpow.pop %v237
  %v239 = vadd.f32 %v238, 1.0
  %v240 = vrcp.pop %v239
  %v241 = vmul.f32 %v239, %v240
  %v242 = vsub.f32 1.0, %v241
  %v243 = vmul.f32 %v240, %v242
  %v244 = vadd.f32 %v240, %v243
  %vm245 = vweird.f32 %v239
  %vm246 = vweird.f32 %v240
  %vm247 = vmor %vm245, %vm246
  %v248 = vsel %vm247, %v240, %v244
  %v249 = vand.u32 2147483647, %v239
  %vm250 = vcmp.eq.f32.partialorder %v249, 8.507059e+37
  %v251 = vand.u32 %v239, 2147483648
  %v252 = vor.u32 1.1754944e-38, %v251
  %v253 = vsel %vm250, %v252, %v248
  %v254 = vmul.f32 1.0, %v253
  %v255 = vtanh.pop %v235
  %v256 = vmul.f32 %v254, %v201
  %258 = vrot.lane.b32.xlu0 %v255, 32
  %v259 = vpop.permute.xlu0 %258
  %v261 = vmul.f32 %v254, %v259
  %263 = vrot.lane.b32.xlu0 %v261, 32
  %v264 = vpop.permute.xlu0 %263
  %v266 = vadd.f32 %v256, %v264
  %v267 = vtanh.pop %v266
  %269 = vrot.lane.b32.xlu0 %v267, 32
  %v270 = vpop.permute.xlu0 %269
  %v272 = vmul.f32 %v254, %v270
  %s273 = scalar_lea.vmem [#allocation2], 16
  %v274 = vld [vmem:[%s273] sm:$0xff]
  %276 = vrot.lane.b32.xlu0 %v272, 64
  %v277 = vpop.permute.xlu0 %276
  %v278 = vsel %vm62, %v277, 0
  %280 = vmatpush.msra.mxu0 0.0
  %281 = vmatpush.msra.mxu0 0.0
  %282 = vmatpush.msra.mxu0 0.0
  %283 = vmatpush.msra.mxu0 0.0
  %284 = vmatpush.msra.mxu0 0.0
  %285 = vmatpush.msra.mxu0 0.0
  %286 = vmatpush.msra.mxu0 0.0
  %287 = vmatpush.msra.mxu0 0.0
  %288 = vmatpush.msra.mxu0 0.0
  %289 = vmatpush.msra.mxu0 0.0
  %290 = vmatpush.msra.mxu0 0.0
  %291 = vmatpush.msra.mxu0 0.0
  %292 = vmatpush.msra.mxu0 %v139
  %293 = vmatpush.msra.mxu0 %v138
  %294 = vmatpush.msra.mxu0 %v137
  %295 = vmatpush.msra.mxu0 %v136
  %296 = vmatmul.f32.gmra.mxu0 %v278
  %v297 = vpop.f32.mrf.mxu0
  %v298 = vadd.f32 0.0, %v297
  %299 = vdwg.mxu0
  %v300 = vadd.f32 %v274, %v298
  %v301 = vxor.u32 %v300, 2147483648
  %v302 = vmul.f32 %v301, 1.442695
  %v303 = vpow.pop %v302
  %v304 = vadd.f32 %v303, 1.0
  %v305 = vrcp.pop %v304
  %v306 = vmul.f32 %v304, %v305
  %v307 = vsub.f32 1.0, %v306
  %v308 = vmul.f32 %v305, %v307
  %v309 = vadd.f32 %v305, %v308
  %vm310 = vweird.f32 %v304
  %vm311 = vweird.f32 %v305
  %vm312 = vmor %vm310, %vm311
  %v313 = vsel %vm312, %v305, %v309
  %v314 = vand.u32 2147483647, %v304
  %vm315 = vcmp.eq.f32.partialorder %v314, 8.507059e+37
  %v316 = vand.u32 %v304, 2147483648
  %v317 = vor.u32 1.1754944e-38, %v316
  %v318 = vsel %vm315, %v317, %v313
  %v319 = vmul.f32 1.0, %v318
  %v320 = vtanh.pop %v300
  %v321 = vmul.f32 %v319, %v266
  %323 = vrot.lane.b32.xlu0 %v320, 32
  %v324 = vpop.permute.xlu0 %323
  %v326 = vmul.f32 %v319, %v324
  %328 = vrot.lane.b32.xlu0 %v326, 32
  %v329 = vpop.permute.xlu0 %328
  %v331 = vadd.f32 %v321, %v329
  %v332 = vtanh.pop %v331
  %334 = vrot.lane.b32.xlu0 %v332, 32
  %v335 = vpop.permute.xlu0 %334
  %v337 = vmul.f32 %v319, %v335
  %s338 = scalar_lea.vmem [#allocation2], 24
  %v339 = vld [vmem:[%s338] sm:$0xff]
  %341 = vrot.lane.b32.xlu0 %v337, 64
  %v342 = vpop.permute.xlu0 %341
  %v343 = vsel %vm62, %v342, 0
  %345 = vmatpush.msra.mxu0 0.0
  %346 = vmatpush.msra.mxu0 0.0
  %347 = vmatpush.msra.mxu0 0.0
  %348 = vmatpush.msra.mxu0 0.0
  %349 = vmatpush.msra.mxu0 0.0
  %350 = vmatpush.msra.mxu0 0.0
  %351 = vmatpush.msra.mxu0 0.0
  %352 = vmatpush.msra.mxu0 0.0
  %353 = vmatpush.msra.mxu0 0.0
  %354 = vmatpush.msra.mxu0 0.0
  %355 = vmatpush.msra.mxu0 0.0
  %356 = vmatpush.msra.mxu0 0.0
  %357 = vmatpush.msra.mxu0 %v139
  %358 = vmatpush.msra.mxu0 %v138
  %359 = vmatpush.msra.mxu0 %v137
  %360 = vmatpush.msra.mxu0 %v136
  %361 = vmatmul.f32.gmra.mxu0 %v343
  %v362 = vpop.f32.mrf.mxu0
  %v363 = vadd.f32 0.0, %v362
  %364 = vdwg.mxu0
  %v365 = vadd.f32 %v339, %v363
  %v366 = vxor.u32 %v365, 2147483648
  %v367 = vmul.f32 %v366, 1.442695
  %v368 = vpow.pop %v367
  %v369 = vadd.f32 %v368, 1.0
  %v370 = vrcp.pop %v369
  %v371 = vmul.f32 %v369, %v370
  %v372 = vsub.f32 1.0, %v371
  %v373 = vmul.f32 %v370, %v372
  %v374 = vadd.f32 %v370, %v373
  %vm375 = vweird.f32 %v369
  %vm376 = vweird.f32 %v370
  %vm377 = vmor %vm375, %vm376
  %v378 = vsel %vm377, %v370, %v374
  %v379 = vand.u32 2147483647, %v369
  %vm380 = vcmp.eq.f32.partialorder %v379, 8.507059e+37
  %v381 = vand.u32 %v369, 2147483648
  %v382 = vor.u32 1.1754944e-38, %v381
  %v383 = vsel %vm380, %v382, %v378
  %v384 = vmul.f32 1.0, %v383
  %v385 = vtanh.pop %v365
  %v386 = vmul.f32 %v384, %v331
  %388 = vrot.lane.b32.xlu0 %v385, 32
  %v389 = vpop.permute.xlu0 %388
  %v391 = vmul.f32 %v384, %v389
  %393 = vrot.lane.b32.xlu0 %v391, 32
  %v394 = vpop.permute.xlu0 %393
  %v396 = vadd.f32 %v386, %v394
  %v397 = vtanh.pop %v396
  %399 = vrot.lane.b32.xlu0 %v397, 32
  %v400 = vpop.permute.xlu0 %399
  %v402 = vmul.f32 %v384, %v400
  %s403 = scalar_lea.vmem [#allocation2], 32
  %v404 = vld [vmem:[%s403] sm:$0xff]
  %406 = vrot.lane.b32.xlu0 %v402, 64
  %v407 = vpop.permute.xlu0 %406
  %v408 = vsel %vm62, %v407, 0
  %410 = vmatpush.msra.mxu0 0.0
  %411 = vmatpush.msra.mxu0 0.0
  %412 = vmatpush.msra.mxu0 0.0
  %413 = vmatpush.msra.mxu0 0.0
  %414 = vmatpush.msra.mxu0 0.0
  %415 = vmatpush.msra.mxu0 0.0
  %416 = vmatpush.msra.mxu0 0.0
  %417 = vmatpush.msra.mxu0 0.0
  %418 = vmatpush.msra.mxu0 0.0
  %419 = vmatpush.msra.mxu0 0.0
  %420 = vmatpush.msra.mxu0 0.0
  %421 = vmatpush.msra.mxu0 0.0
  %422 = vmatpush.msra.mxu0 %v139
  %423 = vmatpush.msra.mxu0 %v138
  %424 = vmatpush.msra.mxu0 %v137
  %425 = vmatpush.msra.mxu0 %v136
  %426 = vmatmul.f32.gmra.mxu0 %v408
  %v427 = vpop.f32.mrf.mxu0
  %v428 = vadd.f32 0.0, %v427
  %429 = vdwg.mxu0
  %v430 = vadd.f32 %v404, %v428
  %v431 = vxor.u32 %v430, 2147483648
  %v432 = vmul.f32 %v431, 1.442695
  %v433 = vpow.pop %v432
  %v434 = vadd.f32 %v433, 1.0
  %v435 = vrcp.pop %v434
  %v436 = vmul.f32 %v434, %v435
  %v437 = vsub.f32 1.0, %v436
  %v438 = vmul.f32 %v435, %v437
  %v439 = vadd.f32 %v435, %v438
  %vm440 = vweird.f32 %v434
  %vm441 = vweird.f32 %v435
  %vm442 = vmor %vm440, %vm441
  %v443 = vsel %vm442, %v435, %v439
  %v444 = vand.u32 2147483647, %v434
  %vm445 = vcmp.eq.f32.partialorder %v444, 8.507059e+37
  %v446 = vand.u32 %v434, 2147483648
  %v447 = vor.u32 1.1754944e-38, %v446
  %v448 = vsel %vm445, %v447, %v443
  %v449 = vmul.f32 1.0, %v448
  %v450 = vtanh.pop %v430
  %v451 = vmul.f32 %v449, %v396
  %453 = vrot.lane.b32.xlu0 %v450, 32
  %v454 = vpop.permute.xlu0 %453
  %v456 = vmul.f32 %v449, %v454
  %458 = vrot.lane.b32.xlu0 %v456, 32
  %v459 = vpop.permute.xlu0 %458
  %v461 = vadd.f32 %v451, %v459
  %v462 = vtanh.pop %v461
  %464 = vrot.lane.b32.xlu0 %v462, 32
  %v465 = vpop.permute.xlu0 %464
  %v467 = vmul.f32 %v449, %v465
  %s468 = scalar_lea.vmem [#allocation2], 40
  %v469 = vld [vmem:[%s468] sm:$0xff]
  %471 = vrot.lane.b32.xlu0 %v467, 64
  %v472 = vpop.permute.xlu0 %471
  %v473 = vsel %vm62, %v472, 0
  %475 = vmatpush.msra.mxu0 0.0
  %476 = vmatpush.msra.mxu0 0.0
  %477 = vmatpush.msra.mxu0 0.0
  %478 = vmatpush.msra.mxu0 0.0
  %479 = vmatpush.msra.mxu0 0.0
  %480 = vmatpush.msra.mxu0 0.0
  %481 = vmatpush.msra.mxu0 0.0
  %482 = vmatpush.msra.mxu0 0.0
  %483 = vmatpush.msra.mxu0 0.0
  %484 = vmatpush.msra.mxu0 0.0
  %485 = vmatpush.msra.mxu0 0.0
  %486 = vmatpush.msra.mxu0 0.0
  %487 = vmatpush.msra.mxu0 %v139
  %488 = vmatpush.msra.mxu0 %v138
  %489 = vmatpush.msra.mxu0 %v137
  %490 = vmatpush.msra.mxu0 %v136
  %491 = vmatmul.f32.gmra.mxu0 %v473
  %v492 = vpop.f32.mrf.mxu0
  %v493 = vadd.f32 0.0, %v492
  %494 = vdwg.mxu0
  %v495 = vadd.f32 %v469, %v493
  %v496 = vxor.u32 %v495, 2147483648
  %v497 = vmul.f32 %v496, 1.442695
  %v498 = vpow.pop %v497
  %v499 = vadd.f32 %v498, 1.0
  %v500 = vrcp.pop %v499
  %v501 = vmul.f32 %v499, %v500
  %v502 = vsub.f32 1.0, %v501
  %v503 = vmul.f32 %v500, %v502
  %v504 = vadd.f32 %v500, %v503
  %vm505 = vweird.f32 %v499
  %vm506 = vweird.f32 %v500
  %vm507 = vmor %vm505, %vm506
  %v508 = vsel %vm507, %v500, %v504
  %v509 = vand.u32 2147483647, %v499
  %vm510 = vcmp.eq.f32.partialorder %v509, 8.507059e+37
  %v511 = vand.u32 %v499, 2147483648
  %v512 = vor.u32 1.1754944e-38, %v511
  %v513 = vsel %vm510, %v512, %v508
  %v514 = vmul.f32 1.0, %v513
  %v515 = vtanh.pop %v495
  %v516 = vmul.f32 %v514, %v461
  %518 = vrot.lane.b32.xlu0 %v515, 32
  %v519 = vpop.permute.xlu0 %518
  %v521 = vmul.f32 %v514, %v519
  %523 = vrot.lane.b32.xlu0 %v521, 32
  %v524 = vpop.permute.xlu0 %523
  %v526 = vadd.f32 %v516, %v524
  %v527 = vtanh.pop %v526
  %529 = vrot.lane.b32.xlu0 %v527, 32
  %v530 = vpop.permute.xlu0 %529
  %v532 = vmul.f32 %v514, %v530
  %s533 = scalar_lea.vmem [#allocation2], 48
  %v534 = vld [vmem:[%s533] sm:$0xff]
  %536 = vrot.lane.b32.xlu0 %v532, 64
  %v537 = vpop.permute.xlu0 %536
  %v538 = vsel %vm62, %v537, 0
  %540 = vmatpush.msra.mxu0 0.0
  %541 = vmatpush.msra.mxu0 0.0
  %542 = vmatpush.msra.mxu0 0.0
  %543 = vmatpush.msra.mxu0 0.0
  %544 = vmatpush.msra.mxu0 0.0
  %545 = vmatpush.msra.mxu0 0.0
  %546 = vmatpush.msra.mxu0 0.0
  %547 = vmatpush.msra.mxu0 0.0
  %548 = vmatpush.msra.mxu0 0.0
  %549 = vmatpush.msra.mxu0 0.0
  %550 = vmatpush.msra.mxu0 0.0
  %551 = vmatpush.msra.mxu0 0.0
  %552 = vmatpush.msra.mxu0 %v139
  %553 = vmatpush.msra.mxu0 %v138
  %554 = vmatpush.msra.mxu0 %v137
  %555 = vmatpush.msra.mxu0 %v136
  %556 = vmatmul.f32.gmra.mxu0 %v538
  %v557 = vpop.f32.mrf.mxu0
  %v558 = vadd.f32 0.0, %v557
  %559 = vdwg.mxu0
  %v560 = vadd.f32 %v534, %v558
  %v561 = vxor.u32 %v560, 2147483648
  %v562 = vmul.f32 %v561, 1.442695
  %v563 = vpow.pop %v562
  %v564 = vadd.f32 %v563, 1.0
  %v565 = vrcp.pop %v564
  %v566 = vmul.f32 %v564, %v565
  %v567 = vsub.f32 1.0, %v566
  %v568 = vmul.f32 %v565, %v567
  %v569 = vadd.f32 %v565, %v568
  %vm570 = vweird.f32 %v564
  %vm571 = vweird.f32 %v565
  %vm572 = vmor %vm570, %vm571
  %v573 = vsel %vm572, %v565, %v569
  %v574 = vand.u32 2147483647, %v564
  %vm575 = vcmp.eq.f32.partialorder %v574, 8.507059e+37
  %v576 = vand.u32 %v564, 2147483648
  %v577 = vor.u32 1.1754944e-38, %v576
  %v578 = vsel %vm575, %v577, %v573
  %v579 = vmul.f32 1.0, %v578
  %v580 = vtanh.pop %v560
  %v581 = vmul.f32 %v579, %v526
  %583 = vrot.lane.b32.xlu0 %v580, 32
  %v584 = vpop.permute.xlu0 %583
  %v586 = vmul.f32 %v579, %v584
  %588 = vrot.lane.b32.xlu0 %v586, 32
  %v589 = vpop.permute.xlu0 %588
  %v591 = vadd.f32 %v581, %v589
  %v592 = vtanh.pop %v591
  %594 = vrot.lane.b32.xlu0 %v592, 32
  %v595 = vpop.permute.xlu0 %594
  %v597 = vmul.f32 %v579, %v595
  %s598 = scalar_lea.vmem [#allocation2], 56
  %v599 = vld [vmem:[%s598] sm:$0xff]
  %601 = vrot.lane.b32.xlu0 %v597, 64
  %v602 = vpop.permute.xlu0 %601
  %v603 = vsel %vm62, %v602, 0
  %605 = vmatpush.msra.mxu0 0.0
  %606 = vmatpush.msra.mxu0 0.0
  %607 = vmatpush.msra.mxu0 0.0
  %608 = vmatpush.msra.mxu0 0.0
  %609 = vmatpush.msra.mxu0 0.0
  %610 = vmatpush.msra.mxu0 0.0
  %611 = vmatpush.msra.mxu0 0.0
  %612 = vmatpush.msra.mxu0 0.0
  %613 = vmatpush.msra.mxu0 0.0
  %614 = vmatpush.msra.mxu0 0.0
  %615 = vmatpush.msra.mxu0 0.0
  %616 = vmatpush.msra.mxu0 0.0
  %617 = vmatpush.msra.mxu0 %v139
  %618 = vmatpush.msra.mxu0 %v138
  %619 = vmatpush.msra.mxu0 %v137
  %620 = vmatpush.msra.mxu0 %v136
  %621 = vmatmul.f32.gmra.mxu0 %v603
  %v622 = vpop.f32.mrf.mxu0
  %v623 = vadd.f32 0.0, %v622
  %624 = vdwg.mxu0
  %v625 = vadd.f32 %v599, %v623
  %v626 = vxor.u32 %v625, 2147483648
  %v627 = vmul.f32 %v626, 1.442695
  %v628 = vpow.pop %v627
  %v629 = vadd.f32 %v628, 1.0
  %v630 = vrcp.pop %v629
  %v631 = vmul.f32 %v629, %v630
  %v632 = vsub.f32 1.0, %v631
  %v633 = vmul.f32 %v630, %v632
  %v634 = vadd.f32 %v630, %v633
  %vm635 = vweird.f32 %v629
  %vm636 = vweird.f32 %v630
  %vm637 = vmor %vm635, %vm636
  %v638 = vsel %vm637, %v630, %v634
  %v639 = vand.u32 2147483647, %v629
  %vm640 = vcmp.eq.f32.partialorder %v639, 8.507059e+37
  %v641 = vand.u32 %v629, 2147483648
  %v642 = vor.u32 1.1754944e-38, %v641
  %v643 = vsel %vm640, %v642, %v638
  %v644 = vmul.f32 1.0, %v643
  %v645 = vtanh.pop %v625
  %v646 = vmul.f32 %v644, %v591
  %648 = vrot.lane.b32.xlu0 %v645, 32
  %v649 = vpop.permute.xlu0 %648
  %v651 = vmul.f32 %v644, %v649
  %653 = vrot.lane.b32.xlu0 %v651, 32
  %v654 = vpop.permute.xlu0 %653
  %v656 = vadd.f32 %v646, %v654
  %v657 = vtanh.pop %v656
  %659 = vrot.lane.b32.xlu0 %v657, 32
  %v660 = vpop.permute.xlu0 %659
  %v662 = vmul.f32 %v644, %v660
  %664 = vrot.lane.b32.xlu0 %v662, 64
  %v665 = vpop.permute.xlu0 %664
  %667 = vst.msk [vmem:[#allocation3] sm:$0xff] %vm62, %v665
  %669 = vrot.lane.b32.xlu0 %v656, 96
  %v670 = vpop.permute.xlu0 %669
  %672 = vst.msk [vmem:[#allocation4] sm:$0xff] %vm62, %v670
  // Predicated region
  $region38: #{lstm_regressor_forward.3} parent=0 // pred_check
    %p673 = pneg %p31
  $region39: #{lstm_regressor_forward.3} parent=0 // pred_check_branch
    %675 = sbr.rel (%p673) target = $region41
  $region40: #{lstm_regressor_forward.3} parent=0 // pred_region
    %v676 = vld [vmem:[%s4] sm:$0xff]
    %v677 = vld [vmem:[%s4 + $0x8] sm:$0xff]
    %v678 = vld [vmem:[%s4 + $0x10] sm:$0xff]
    %v679 = vld [vmem:[%s4 + $0x18] sm:$0xff]
    %v680 = vld [vmem:[%s5] sm:$0x1]
    %v682 = vperm.slane %v680, 0
    %v684 = vsel %vm62, %v665, 0
    %686 = vmatpush.msra.mxu0 0.0
    %687 = vmatpush.msra.mxu0 0.0
    %688 = vmatpush.msra.mxu0 0.0
    %689 = vmatpush.msra.mxu0 0.0
    %690 = vmatpush.msra.mxu0 0.0
    %691 = vmatpush.msra.mxu0 0.0
    %692 = vmatpush.msra.mxu0 0.0
    %693 = vmatpush.msra.mxu0 0.0
    %694 = vmatpush.msra.mxu0 0.0
    %695 = vmatpush.msra.mxu0 0.0
    %696 = vmatpush.msra.mxu0 0.0
    %697 = vmatpush.msra.mxu0 0.0
    %698 = vmatpush.msra.mxu0 %v679
    %699 = vmatpush.msra.mxu0 %v678
    %700 = vmatpush.msra.mxu0 %v677
    %701 = vmatpush.msra.mxu0 %v676
    %702 = vmatmul.f32.gmra.mxu0 %v684
    %v703 = vpop.f32.mrf.mxu0
    %v704 = vadd.f32 %v682, %v703
    %705 = vdwg.mxu0
    %v706 = vmax.f32 %v704, 0.0
    %v707 = vld [vmem:[%s6] sm:$0x1]
    %v709 = vperm.slane %v707, 0
    %v711 = vmul.f32 %v706, %v709
    %vm712 = vcmask 130048
    %v713 = vsel %vm712, %v711, 0.0
    %714 = vadd.xlane.f32.xlu0 %v713
    %v715 = vpop.xlane.xlu0 %714
    %v716 = vld [vmem:[#allocation5] sm:$0x1]
    %v718 = vperm.slane %v716, 0
    %v720 = vadd.f32 %v715, %v718
    %vm721 = vcmask 7168
    %722 = vst.msk [vmem:[%s8] sm:$0xff] %vm721, %v720
  $region41: #{lstm_regressor_forward.3} parent=0 // pred_fallthru
    _
  // Predicated region
  $region42: #{lstm_regressor_forward.3} parent=0 // pred_check
    _
  $region43: #{lstm_regressor_forward.3} parent=0 // pred_check_branch
    %724 = sbr.rel (0) target = $region45
  $region44: #{lstm_regressor_forward.3} parent=0 // pred_region
    _
  $region45: #{lstm_regressor_forward.3} parent=0 // pred_fallthru
    _
  // Predicated region
  $region46: #{lstm_regressor_forward.3} parent=0 // pred_check
    _
  $region47: #{lstm_regressor_forward.3} parent=0 // pred_check_branch
    %726 = sbr.rel (0) target = $region49
  $region48: #{lstm_regressor_forward.3} parent=0 // pred_region
    _
  $region49: #{lstm_regressor_forward.3} parent=0 // pred_fallthru
    _

</llo_original>
